<compile_context>
chip_gen: v5e
topology: v5e:2x2
jax: 0.10.0
libtpu: 0.0.40
codegen_flags: <defaults>
</compile_context>

<pallas_src>
import functools

import jax
import jax.numpy as jnp
from jax.experimental import pallas as pl
from jax.experimental.pallas import tpu as pltpu

KH = KW = 4
STRIDE = 2
PAD = 1
TM_DEFAULT = 512          # M-tile: big enough for ~85% HBM roofline, tiny VMEM


def _round_up(n, m):
    return ((n + m - 1) // m) * m


# ----------------------------- Pallas kernel ------------------------------ #
def _gemm_bias_act_kernel(x_ref, w_ref, b_ref, o_ref, *, apply_relu):
    # x_ref: (TM, K)  w_ref: (K, N)  b_ref: (1, N)  o_ref: (TM, N)
    acc = jnp.dot(x_ref[...], w_ref[...], preferred_element_type=jnp.float32)
    acc = acc + b_ref[...]                    # (1,N) broadcast on the VPU
    if apply_relu:
        acc = jnp.maximum(acc, 0.0)
    o_ref[...] = acc.astype(o_ref.dtype)


def gemm_bias_act(x, w, b, *, apply_relu, tm=TM_DEFAULT):
    """y = relu?(x @ w + b); tiled over M, pipelined; K, N pre-padded (N%128==0)."""
    M, K = x.shape
    K2, N = w.shape
    assert K == K2 and b.shape == (1, N)

    # Block over M only: small M -> one full-extent block (always legal);
    # otherwise 8-aligned TM tiles (partial last tile handled by Pallas).
    TM = M if M <= tm else tm
    grid_m = pl.cdiv(M, TM)

    kernel = functools.partial(_gemm_bias_act_kernel, apply_relu=apply_relu)
    cost = pl.CostEstimate(
        flops=2 * M * K * N,
        transcendentals=0,
        bytes_accessed=4 * (M * K + K * N + N + M * N),
    )
    return pl.pallas_call(
        kernel,
        out_shape=jax.ShapeDtypeStruct((M, N), jnp.float32),
        grid=(grid_m,),
        in_specs=[
            pl.BlockSpec((TM, K), lambda i: (i, 0)),   # activations streamed per M-tile
            pl.BlockSpec((K, N), lambda i: (0, 0)),    # weights resident (same block)
            pl.BlockSpec((1, N), lambda i: (0, 0)),    # bias resident
        ],
        out_specs=pl.BlockSpec((TM, N), lambda i: (i, 0)),
        compiler_params=pltpu.CompilerParams(
            dimension_semantics=("parallel",)),        # megacore split on v7x
        cost_estimate=cost,
    )(x, w, b)


# ------------------------------ glue (JAX) -------------------------------- #
def im2col_nhwc(x):
    """x: (B, H, W, C) -> (B*Ho*Wo, KH*KW*C); patch flatten order (kh, kw, c)."""
    B, H, W, C = x.shape
    xp = jnp.pad(x, ((0, 0), (PAD, PAD), (PAD, PAD), (0, 0)))
    Ho = (H + 2 * PAD - KH) // STRIDE + 1
    Wo = (W + 2 * PAD - KW) // STRIDE + 1
    cols = []
    for i in range(KH):
        for j in range(KW):
            cols.append(xp[:, i:i + STRIDE * Ho:STRIDE,
                           j:j + STRIDE * Wo:STRIDE, :])
    patches = jnp.stack(cols, axis=3)                  # (B, Ho, Wo, KH*KW, C)
    return patches.reshape(B * Ho * Wo, KH * KW * C), Ho, Wo


def conv_relu_nhwc(x, layer):
    """Conv2d(k=4, s=2, p=1) + ReLU. NHWC in / NHWC out (true channel count)."""
    B, H, W, C = x.shape
    cin_pad = layer["cin_pad"]
    if C < cin_pad:                                    # only layer 1 (3 -> 8)
        x = jnp.pad(x, ((0, 0), (0, 0), (0, 0), (0, cin_pad - C)))
    pm, Ho, Wo = im2col_nhwc(x)                        # (M, K), K % 8 == 0 (here %128)
    y = gemm_bias_act(pm, layer["w"], layer["b"], apply_relu=True)
    cout = layer["cout"]
    return y[:, :cout].reshape(B, Ho, Wo, cout)


def flow_model_forward(x_nchw, params):
    """Reproduces FlowBasedModel.forward (convs+relu, flatten, fc)."""
    x = x_nchw.transpose(0, 2, 3, 1)                   # NCHW -> NHWC, once
    for layer in params["convs"]:
        x = conv_relu_nhwc(x, layer)
    B = x.shape[0]
    xf = x.reshape(B, -1)                              # NHWC flatten (fc_w permuted to match)
    y = gemm_bias_act(xf, params["fc_w"], params["fc_b"], apply_relu=False)
    return y[:, :params["fc_n"]]


# --------------------------- param preparation ----------------------------- #
def prepare_params(raw):
    """Permute / pad PyTorch-layout params once, so the hot path has no transposes."""
    convs = []
    for (w, b) in raw["convs"]:
        cout, cin, kh, kw = w.shape
        cin_pad = _round_up(cin, 8)                    # layer1: K = 16*8 = 128
        cout_pad = _round_up(cout, 128)                # lane-dense N
        wp = jnp.pad(w, ((0, cout_pad - cout), (0, cin_pad - cin), (0, 0), (0, 0)))
        # (Cout, Cin, KH, KW) -> (KH, KW, Cin, Cout) flatten == im2col column order
        wm = wp.transpose(2, 3, 1, 0).reshape(kh * kw * cin_pad, cout_pad)
        bp = jnp.pad(b, (0, cout_pad - cout)).reshape(1, cout_pad)
        convs.append({"w": wm, "b": bp, "cin_pad": cin_pad, "cout": cout})

    fc_w, fc_b = raw["fc_w"], raw["fc_b"]
    n_out, feat = fc_w.shape
    c = raw["convs"][-1][0].shape[0]                   # num_filters at flatten
    hw = int(round((feat // c) ** 0.5))
    assert c * hw * hw == feat
    n_pad = _round_up(n_out, 128)
    # torch flattens (C, H, W); our activations flatten (H, W, C): permute columns.
    w_nhwc = fc_w.reshape(n_out, c, hw, hw).transpose(0, 2, 3, 1).reshape(n_out, feat)
    wfc = jnp.pad(w_nhwc.T, ((0, 0), (0, n_pad - n_out)))       # (feat, n_pad)
    bfc = jnp.pad(fc_b, (0, n_pad - n_out)).reshape(1, n_pad)
    return {"convs": convs, "fc_w": wfc, "fc_b": bfc, "fc_n": n_out}


# ------------------------------ reference ---------------------------------- #
def forward_reference(x, raw):
    for (w, b) in raw["convs"]:
        x = jax.lax.conv_general_dilated(
            x, w, window_strides=(STRIDE, STRIDE),
            padding=((PAD, PAD), (PAD, PAD)),
            dimension_numbers=("NCHW", "OIHW", "NCHW"))
        x = jax.nn.relu(x + b.reshape(1, -1, 1, 1))
    x = x.reshape(x.shape[0], -1)
    return x @ raw["fc_w"].T + raw["fc_b"]


# ------------------------------ param init --------------------------------- #
def init_params(key, in_channels, num_filters, num_layers):
    convs = []
    c_in = in_channels
    for _ in range(num_layers):
        key, kw_, kb_ = jax.random.split(key, 3)
        w = 0.05 * jax.random.normal(kw_, (num_filters, c_in, KH, KW), jnp.float32)
        b = 0.01 * jax.random.normal(kb_, (num_filters,), jnp.float32)
        convs.append((w, b))
        c_in = num_filters
    key, kw_, kb_ = jax.random.split(key, 3)
    feat = num_filters * 8 * 8                          # fc expects final spatial 8x8
    fc_w = 0.05 * jax.random.normal(kw_, (10, feat), jnp.float32)
    fc_b = 0.01 * jax.random.normal(kb_, (10,), jnp.float32)
    return {"convs": convs, "fc_w": fc_w, "fc_b": fc_b}


if __name__ == "__main__":
    # num_layers=2 halvings 32x32 -> 8x8 so the module's hardcoded fc(num_filters*8*8, 10)
    # shape holds.  B=4 exercises the multi-tile (grid > 1) GEMM path on layer 1.
    B, CIN, NUM_FILTERS, NUM_LAYERS, H = 4, 3, 16, 2, 32

    key = jax.random.PRNGKey(0)
    key, kx = jax.random.split(key)
    x = jax.random.normal(kx, (B, CIN, H, H), jnp.float32)
    raw = init_params(key, CIN, NUM_FILTERS, NUM_LAYERS)
    params = prepare_params(raw)

    fwd = jax.jit(functools.partial(flow_model_forward, params=params))
    out = jax.block_until_ready(fwd(x))
    assert out.shape == (B, 10), out.shape

    ref = jax.block_until_ready(forward_reference(x, raw))
    max_err = float(jnp.max(jnp.abs(out - ref)))
    assert jnp.allclose(out, ref, rtol=1e-4, atol=1e-4), max_err

    print("KERNEL_OK")
</pallas_src>

<mosaic_0001>
module attributes {stable_mosaic.version = 11 : i64} {
  func.func @_gemm_bias_act_kernel(%arg0: i32, %arg1: memref<512x128xf32, #tpu.memory_space<vmem>>, %arg2: memref<128x128xf32, #tpu.memory_space<vmem>>, %arg3: memref<1x128xf32, #tpu.memory_space<vmem>>, %arg4: memref<512x128xf32, #tpu.memory_space<vmem>>) attributes {dimension_semantics = [#tpu.dimension_semantics<parallel>], iteration_bounds = array<i64: 2>, scalar_prefetch = 0 : i64, scratch_operands = 0 : i64, tpu.core_type = #tpu.core_type<tc>, window_params = [{transform_indices = @transform_0, window_bounds = array<i64: 512, 128>}, {pipeline_mode = #tpu.pipeline_mode<synchronous>, transform_indices = @transform_1, window_bounds = array<i64: 128, 128>}, {pipeline_mode = #tpu.pipeline_mode<synchronous>, transform_indices = @transform_2, window_bounds = array<i64: 1, 128>}, {transform_indices = @transform_3, window_bounds = array<i64: 512, 128>}]} {
    %c0 = arith.constant 0 : index
    %c0_0 = arith.constant 0 : index
    %0 = vector.load %arg1[%c0, %c0_0] : memref<512x128xf32, #tpu.memory_space<vmem>>, vector<512x128xf32>
    %c0_1 = arith.constant 0 : index
    %c0_2 = arith.constant 0 : index
    %1 = vector.load %arg2[%c0_1, %c0_2] : memref<128x128xf32, #tpu.memory_space<vmem>>, vector<128x128xf32>
    %cst = arith.constant dense<0.000000e+00> : vector<512x128xf32>
    %2 = tpu.matmul %0, %1, %cst {dimension_numbers = #tpu.dot_dimension_numbers<[1], [0], [0], [1], [0, 0, 1, 1], [], []>} : vector<512x128xf32>, vector<128x128xf32>, vector<512x128xf32> -> vector<512x128xf32>
    %c0_3 = arith.constant 0 : index
    %c0_4 = arith.constant 0 : index
    %3 = vector.load %arg3[%c0_3, %c0_4] : memref<1x128xf32, #tpu.memory_space<vmem>>, vector<1x128xf32>
    %4 = vector.broadcast %3 : vector<1x128xf32> to vector<512x128xf32>
    %5 = arith.addf %2, %4 : vector<512x128xf32>
    %cst_5 = arith.constant 0.000000e+00 : f32
    %6 = vector.broadcast %cst_5 : f32 to vector<512x128xf32>
    %7 = arith.maximumf %5, %6 : vector<512x128xf32>
    %c0_6 = arith.constant 0 : index
    %c0_7 = arith.constant 0 : index
    %8 = vector.load %arg4[%c0_6, %c0_7] : memref<512x128xf32, #tpu.memory_space<vmem>>, vector<512x128xf32>
    tpu.vector_store %arg4[%c0_6, %c0_7], %7 {strides = array<i32>} : memref<512x128xf32, #tpu.memory_space<vmem>>, vector<512x128xf32>,
    return
  }
  func.func @transform_0(%arg0: i32) -> (i32, i32) {
    %c0_i32 = arith.constant 0 : i32
    %c0_i32_0 = arith.constant 0 : i32
    return %arg0, %c0_i32 : i32, i32
  }
  func.func @transform_1(%arg0: i32) -> (i32, i32) {
    %c0_i32 = arith.constant 0 : i32
    %c0_i32_0 = arith.constant 0 : i32
    %c0_i32_1 = arith.constant 0 : i32
    return %c0_i32, %c0_i32_0 : i32, i32
  }
  func.func @transform_2(%arg0: i32) -> (i32, i32) {
    %c0_i32 = arith.constant 0 : i32
    %c0_i32_0 = arith.constant 0 : i32
    %c0_i32_1 = arith.constant 0 : i32
    return %c0_i32, %c0_i32_0 : i32, i32
  }
  func.func @transform_3(%arg0: i32) -> (i32, i32) {
    %c0_i32 = arith.constant 0 : i32
    %c0_i32_0 = arith.constant 0 : i32
    return %arg0, %c0_i32 : i32, i32
  }
}

module attributes {stable_mosaic.version = 11 : i64} {
  func.func @_gemm_bias_act_kernel(%arg0: i32, %arg1: memref<256x256xf32, #tpu.memory_space<vmem>>, %arg2: memref<256x128xf32, #tpu.memory_space<vmem>>, %arg3: memref<1x128xf32, #tpu.memory_space<vmem>>, %arg4: memref<256x128xf32, #tpu.memory_space<vmem>>) attributes {dimension_semantics = [#tpu.dimension_semantics<parallel>], iteration_bounds = array<i64: 1>, scalar_prefetch = 0 : i64, scratch_operands = 0 : i64, tpu.core_type = #tpu.core_type<tc>, window_params = [{transform_indices = @transform_0, window_bounds = array<i64: 256, 256>}, {pipeline_mode = #tpu.pipeline_mode<synchronous>, transform_indices = @transform_1, window_bounds = array<i64: 256, 128>}, {pipeline_mode = #tpu.pipeline_mode<synchronous>, transform_indices = @transform_2, window_bounds = array<i64: 1, 128>}, {transform_indices = @transform_3, window_bounds = array<i64: 256, 128>}]} {
    %c0 = arith.constant 0 : index
    %c0_0 = arith.constant 0 : index
    %0 = vector.load %arg1[%c0, %c0_0] : memref<256x256xf32, #tpu.memory_space<vmem>>, vector<256x256xf32>
    %c0_1 = arith.constant 0 : index
    %c0_2 = arith.constant 0 : index
    %1 = vector.load %arg2[%c0_1, %c0_2] : memref<256x128xf32, #tpu.memory_space<vmem>>, vector<256x128xf32>
    %cst = arith.constant dense<0.000000e+00> : vector<256x128xf32>
    %2 = tpu.matmul %0, %1, %cst {dimension_numbers = #tpu.dot_dimension_numbers<[1], [0], [0], [1], [0, 0, 1, 1], [], []>} : vector<256x256xf32>, vector<256x128xf32>, vector<256x128xf32> -> vector<256x128xf32>
    %c0_3 = arith.constant 0 : index
    %c0_4 = arith.constant 0 : index
    %3 = vector.load %arg3[%c0_3, %c0_4] : memref<1x128xf32, #tpu.memory_space<vmem>>, vector<1x128xf32>
    %4 = vector.broadcast %3 : vector<1x128xf32> to vector<256x128xf32>
    %5 = arith.addf %2, %4 : vector<256x128xf32>
    %cst_5 = arith.constant 0.000000e+00 : f32
    %6 = vector.broadcast %cst_5 : f32 to vector<256x128xf32>
    %7 = arith.maximumf %5, %6 : vector<256x128xf32>
    %c0_6 = arith.constant 0 : index
    %c0_7 = arith.constant 0 : index
    %8 = vector.load %arg4[%c0_6, %c0_7] : memref<256x128xf32, #tpu.memory_space<vmem>>, vector<256x128xf32>
    tpu.vector_store %arg4[%c0_6, %c0_7], %7 {strides = array<i32>} : memref<256x128xf32, #tpu.memory_space<vmem>>, vector<256x128xf32>,
    return
  }
  func.func @transform_0(%arg0: i32) -> (i32, i32) {
    %c0_i32 = arith.constant 0 : i32
    %c0_i32_0 = arith.constant 0 : i32
    return %arg0, %c0_i32 : i32, i32
  }
  func.func @transform_1(%arg0: i32) -> (i32, i32) {
    %c0_i32 = arith.constant 0 : i32
    %c0_i32_0 = arith.constant 0 : i32
    %c0_i32_1 = arith.constant 0 : i32
    return %c0_i32, %c0_i32_0 : i32, i32
  }
  func.func @transform_2(%arg0: i32) -> (i32, i32) {
    %c0_i32 = arith.constant 0 : i32
    %c0_i32_0 = arith.constant 0 : i32
    %c0_i32_1 = arith.constant 0 : i32
    return %c0_i32, %c0_i32_0 : i32, i32
  }
  func.func @transform_3(%arg0: i32) -> (i32, i32) {
    %c0_i32 = arith.constant 0 : i32
    %c0_i32_0 = arith.constant 0 : i32
    return %arg0, %c0_i32 : i32, i32
  }
}

module attributes {stable_mosaic.version = 11 : i64} {
  func.func @_gemm_bias_act_kernel(%arg0: i32, %arg1: memref<4x1024xf32, #tpu.memory_space<vmem>>, %arg2: memref<1024x128xf32, #tpu.memory_space<vmem>>, %arg3: memref<1x128xf32, #tpu.memory_space<vmem>>, %arg4: memref<4x128xf32, #tpu.memory_space<vmem>>) attributes {dimension_semantics = [#tpu.dimension_semantics<parallel>], iteration_bounds = array<i64: 1>, scalar_prefetch = 0 : i64, scratch_operands = 0 : i64, tpu.core_type = #tpu.core_type<tc>, window_params = [{transform_indices = @transform_0, window_bounds = array<i64: 4, 1024>}, {pipeline_mode = #tpu.pipeline_mode<synchronous>, transform_indices = @transform_1, window_bounds = array<i64: 1024, 128>}, {pipeline_mode = #tpu.pipeline_mode<synchronous>, transform_indices = @transform_2, window_bounds = array<i64: 1, 128>}, {transform_indices = @transform_3, window_bounds = array<i64: 4, 128>}]} {
    %c0 = arith.constant 0 : index
    %c0_0 = arith.constant 0 : index
    %0 = vector.load %arg1[%c0, %c0_0] : memref<4x1024xf32, #tpu.memory_space<vmem>>, vector<4x1024xf32>
    %c0_1 = arith.constant 0 : index
    %c0_2 = arith.constant 0 : index
    %1 = vector.load %arg2[%c0_1, %c0_2] : memref<1024x128xf32, #tpu.memory_space<vmem>>, vector<1024x128xf32>
    %cst = arith.constant dense<0.000000e+00> : vector<4x128xf32>
    %2 = tpu.matmul %0, %1, %cst {dimension_numbers = #tpu.dot_dimension_numbers<[1], [0], [0], [1], [0, 0, 1, 1], [], []>} : vector<4x1024xf32>, vector<1024x128xf32>, vector<4x128xf32> -> vector<4x128xf32>
    %c0_3 = arith.constant 0 : index
    %c0_4 = arith.constant 0 : index
    %3 = vector.load %arg3[%c0_3, %c0_4] : memref<1x128xf32, #tpu.memory_space<vmem>>, vector<1x128xf32>
    %4 = vector.broadcast %3 : vector<1x128xf32> to vector<4x128xf32>
    %5 = arith.addf %2, %4 : vector<4x128xf32>
    %c0_5 = arith.constant 0 : index
    %c0_6 = arith.constant 0 : index
    %6 = vector.load %arg4[%c0_5, %c0_6] : memref<4x128xf32, #tpu.memory_space<vmem>>, vector<4x128xf32>
    tpu.vector_store %arg4[%c0_5, %c0_6], %5 {strides = array<i32>} : memref<4x128xf32, #tpu.memory_space<vmem>>, vector<4x128xf32>,
    return
  }
  func.func @transform_0(%arg0: i32) -> (i32, i32) {
    %c0_i32 = arith.constant 0 : i32
    %c0_i32_0 = arith.constant 0 : i32
    return %arg0, %c0_i32 : i32, i32
  }
  func.func @transform_1(%arg0: i32) -> (i32, i32) {
    %c0_i32 = arith.constant 0 : i32
    %c0_i32_0 = arith.constant 0 : i32
    %c0_i32_1 = arith.constant 0 : i32
    return %c0_i32, %c0_i32_0 : i32, i32
  }
  func.func @transform_2(%arg0: i32) -> (i32, i32) {
    %c0_i32 = arith.constant 0 : i32
    %c0_i32_0 = arith.constant 0 : i32
    %c0_i32_1 = arith.constant 0 : i32
    return %c0_i32, %c0_i32_0 : i32, i32
  }
  func.func @transform_3(%arg0: i32) -> (i32, i32) {
    %c0_i32 = arith.constant 0 : i32
    %c0_i32_0 = arith.constant 0 : i32
    return %arg0, %c0_i32 : i32, i32
  }
}

</mosaic_0001>

<llo_original>
// kernel: flow_model_forward.3
$region0: #{flow_model_forward.3}
  #allocation0 [shape = 'u32[]', space=smem, size = 0x4, offset = 0x4, fixed_abs, tag = 'smem constant byte address 0x4 - core index']
  #allocation1 [shape = 'u32[72,128]{1,0:T(1,128)}', space=vmem, size = 0x9000, scoped, tag = 'internal scratch']
  %s0 = inlined_call_operand.vmem [shape: f32[1024,128], index: 0, kind: input, shape index: {}]
  %s1 = inlined_call_operand.vmem [shape: f32[128,128], index: 1, kind: input, shape index: {}]
  %s2 = inlined_call_operand.vmem [shape: f32[1,128], index: 2, kind: input, shape index: {}]
  %s3 = inlined_call_operand.vmem [shape: f32[1024,128], index: 3, kind: output, shape index: {}]
  %s4 = sld [smem:[#allocation0]]
  $region45: #{flow_model_forward.3} parent=0
    _
  %s6 = ssub.s32 1, %s4
  %s7 = scalar_select 0, %s6, %s4
  loop: start=0, step=1, limit=4
  $region2: #{flow_model_forward.3} parent=0 // loop_pre_header
    _
  $region3: #{flow_model_forward.3} parent=0 // loop_header
    %s9 = sphi 0, %s13
    %p10 = scmp.ge.s32.totalorder %s9, 4
    %s19 = sphi 0, %s21
    %s22 = sphi 0, %s19
    %s23 = sphi 0, %s22
    %s39 = sphi 0, %s23
    %s43 = sphi 0, %s43
    %s45 = sphi 0, %s43
    %s46 = sphi 0, %s45
    %s60 = sphi 0, %s46
    %s64 = sphi 0, %s64
    %s66 = sphi 0, %s64
    %s67 = sphi 0, %s66
    %s81 = sphi 0, %s67
    %s87 = sphi 0, %s89
    %s90 = sphi 0, %s87
    %s91 = sphi 0, %s90
    %s107 = sphi 0, %s91
  $region4: #{flow_model_forward.3} parent=0 // loop_header_branch
    %12 = sbr.rel (%p10) target = $region8
  $region5: #{flow_model_forward.3} parent=0 // loop_body
    %s14 = ssub.s32 %s9, 1
    %s15 = ssub.s32 %s9, 2
    %s16 = sadd.s32 %s9, 1
    %s17 = ssub.s32 %s9, %s16
    %p18 = scmp.eq.s32.totalorder %s17, 0
    %s20 = sadd.s32 %s19, 1
    %s21 = scalar_select %p18, %s19, %s20
    %p24 = pneg %p18
    %p25 = scmp.eq.s32.totalorder %s9, 1
    %p26 = por %p24, %p25
    %p27 = scmp.ne.s32.totalorder %s19, %s22
    %p28 = scmp.eq.s32.totalorder %s9, 0
    %p29 = por %p27, %p28
    %p30 = scmp.ne.s32.totalorder %s19, %s22
    %p31 = scmp.eq.s32.totalorder %s14, 1
    %p32 = por %p30, %p31
    %p33 = scmp.ne.s32.totalorder %s22, %s23
    %p34 = scmp.eq.s32.totalorder %s14, 0
    %p35 = por %p33, %p34
    %p36 = scmp.ne.s32.totalorder %s22, %s23
    %p37 = scmp.eq.s32.totalorder %s15, 1
    %p38 = por %p36, %p37
    %p40 = scmp.ne.s32.totalorder %s23, %s39
    %p41 = scmp.eq.s32.totalorder %s15, 0
    %p42 = por %p40, %p41
    %s44 = sadd.s32 %s43, 1
    %p47 = scmp.eq.s32.totalorder %s9, 1
    %p48 = scmp.ne.s32.totalorder %s43, %s45
    %p49 = scmp.eq.s32.totalorder %s9, 0
    %p50 = por %p48, %p49
    %p51 = scmp.ne.s32.totalorder %s43, %s45
    %p52 = scmp.eq.s32.totalorder %s14, 1
    %p53 = por %p51, %p52
    %p54 = scmp.ne.s32.totalorder %s45, %s46
    %p55 = scmp.eq.s32.totalorder %s14, 0
    %p56 = por %p54, %p55
    %p57 = scmp.ne.s32.totalorder %s45, %s46
    %p58 = scmp.eq.s32.totalorder %s15, 1
    %p59 = por %p57, %p58
    %p61 = scmp.ne.s32.totalorder %s46, %s60
    %p62 = scmp.eq.s32.totalorder %s15, 0
    %p63 = por %p61, %p62
    %s65 = sadd.s32 %s64, 1
    %p68 = scmp.eq.s32.totalorder %s9, 1
    %p69 = scmp.ne.s32.totalorder %s64, %s66
    %p70 = scmp.eq.s32.totalorder %s9, 0
    %p71 = por %p69, %p70
    %p72 = scmp.ne.s32.totalorder %s64, %s66
    %p73 = scmp.eq.s32.totalorder %s14, 1
    %p74 = por %p72, %p73
    %p75 = scmp.ne.s32.totalorder %s66, %s67
    %p76 = scmp.eq.s32.totalorder %s14, 0
    %p77 = por %p75, %p76
    %p78 = scmp.ne.s32.totalorder %s66, %s67
    %p79 = scmp.eq.s32.totalorder %s15, 1
    %p80 = por %p78, %p79
    %p82 = scmp.ne.s32.totalorder %s67, %s81
    %p83 = scmp.eq.s32.totalorder %s15, 0
    %p84 = por %p82, %p83
    %s85 = ssub.s32 %s9, %s16
    %p86 = scmp.eq.s32.totalorder %s85, 0
    %s88 = sadd.s32 %s87, 1
    %s89 = scalar_select %p86, %s87, %s88
    %p92 = pneg %p86
    %p93 = scmp.eq.s32.totalorder %s9, 1
    %p94 = por %p92, %p93
    %p95 = scmp.ne.s32.totalorder %s87, %s90
    %p96 = scmp.eq.s32.totalorder %s9, 0
    %p97 = por %p95, %p96
    %p98 = scmp.ne.s32.totalorder %s87, %s90
    %p99 = scmp.eq.s32.totalorder %s14, 1
    %p100 = por %p98, %p99
    %p101 = scmp.ne.s32.totalorder %s90, %s91
    %p102 = scmp.eq.s32.totalorder %s14, 0
    %p103 = por %p101, %p102
    %p104 = scmp.ne.s32.totalorder %s90, %s91
    %p105 = scmp.eq.s32.totalorder %s15, 1
    %p106 = por %p104, %p105
    %p108 = scmp.ne.s32.totalorder %s91, %s107
    %p109 = scmp.eq.s32.totalorder %s15, 0
    %p110 = por %p108, %p109
    %p111 = scmp.le.s32.totalorder 1, %s9
    %p112 = scmp.lt.s32.totalorder %s9, 3
    %p113 = pnand %p111, %p112
    %p114 = pneg %p113
    // Predicated region
    $region9: #{flow_model_forward.3} parent=5 // pred_check
      _
    $region10: #{flow_model_forward.3} parent=5 // pred_check_branch
      %116 = sbr.rel (%p113) target = $region12
    $region11: #{flow_model_forward.3} parent=5 // pred_region
      %s117 = ssub.s32 %s9, 1
      // Predicated region
      $region13: #{flow_model_forward.3} parent=11 // pred_check
        %p118 = pneg %p56
      $region14: #{flow_model_forward.3} parent=11 // pred_check_branch
        %120 = sbr.rel (%p118) target = $region16
      $region15: #{flow_model_forward.3} parent=11 // pred_region
        _
      $region16: #{flow_model_forward.3} parent=11 // pred_fallthru
        _
      // Predicated region
      $region17: #{flow_model_forward.3} parent=11 // pred_check
        %p121 = pneg %p77
      $region18: #{flow_model_forward.3} parent=11 // pred_check_branch
        %123 = sbr.rel (%p121) target = $region20
      $region19: #{flow_model_forward.3} parent=11 // pred_region
        _
      $region20: #{flow_model_forward.3} parent=11 // pred_fallthru
        _
    $region12: #{flow_model_forward.3} parent=5 // pred_fallthru
      _
    %p124 = scmp.lt.s32.totalorder %s9, 2
    // Predicated region
    $region21: #{flow_model_forward.3} parent=5 // pred_check
      %p125 = pneg %p124
    $region22: #{flow_model_forward.3} parent=5 // pred_check_branch
      %127 = sbr.rel (%p125) target = $region24
    $region23: #{flow_model_forward.3} parent=5 // pred_region
      // Predicated region
      $region25: #{flow_model_forward.3} parent=23 // pred_check
        %p128 = pneg %p29
      $region26: #{flow_model_forward.3} parent=23 // pred_check_branch
        %130 = sbr.rel (%p128) target = $region28
      $region27: #{flow_model_forward.3} parent=23 // pred_region
        %s131 = smul.u32 64, %s9
        %p132 = scmp.lt.s32.totalorder %s131, 127
        %s133 = scalar_select %p132, %s131, 127
        %s134 = smul.addr %s133, 8
        %s135 = scalar_lea.vmem %s0, %s134
        %s136 = smul.u32 64, %s9
      $region28: #{flow_model_forward.3} parent=23 // pred_fallthru
        _
    $region24: #{flow_model_forward.3} parent=5 // pred_fallthru
      _
    %p137 = scmp.le.s32.totalorder 1, %s9
    %p138 = scmp.lt.s32.totalorder %s9, 3
    %p139 = pnand %p137, %p138
    %p140 = pneg %p139
    // Predicated region
    $region29: #{flow_model_forward.3} parent=5 // pred_check
      _
    $region30: #{flow_model_forward.3} parent=5 // pred_check_branch
      %142 = sbr.rel (%p139) target = $region32
    $region31: #{flow_model_forward.3} parent=5 // pred_region
      %s143 = ssub.s32 %s9, 1
      %s144 = smul.u32 64, %s14
      %p145 = scmp.lt.s32.totalorder %s144, 127
      %s146 = scalar_select %p145, %s144, 127
      %s147 = smul.addr %s146, 8
      %s148 = scalar_lea.vmem %s0, %s147
      %p149 = pneg %p35
      %p150 = pneg %p32
      %p151 = pneg %p56
      %p152 = pneg %p53
      %p153 = pneg %p77
      %p154 = pneg %p74
      %p155 = pneg %p103
      %p156 = pneg %p100
      %s157 = smul.u32 64, %s14
      %p158 = scmp.lt.s32.totalorder %s157, 127
      %s159 = scalar_select %p158, %s157, 127
      %s160 = smul.addr %s159, 8
      %s161 = scalar_lea.vmem %s3, %s160
      %s162 = smul.u32 64, %s14
      %p163 = scmp.lt.s32.totalorder %s162, 127
      %s164 = scalar_select %p163, %s162, 127
      %s165 = smul.addr %s164, 8
      %s166 = scalar_lea.vmem %s0, %s165
      %s167 = smul.u32 64, %s14
      %s168 = smul.u32 64, %s14
      %p169 = scmp.lt.s32.totalorder %s168, 127
      %s170 = scalar_select %p169, %s168, 127
      %s171 = smul.addr %s170, 8
      %s172 = scalar_lea.vmem %s3, %s171
      %s173 = smul.u32 64, %s14
      %v174 = vld [vmem:[%s166] sm:$0xff]
      %v175 = vld [vmem:[%s166 + $0x8] sm:$0xff]
      %v176 = vld [vmem:[%s166 + $0x10] sm:$0xff]
      %v177 = vld [vmem:[%s166 + $0x18] sm:$0xff]
      %v178 = vld [vmem:[%s166 + $0x20] sm:$0xff]
      %v179 = vld [vmem:[%s166 + $0x28] sm:$0xff]
      %v180 = vld [vmem:[%s166 + $0x30] sm:$0xff]
      %v181 = vld [vmem:[%s166 + $0x38] sm:$0xff]
      %v182 = vld [vmem:[%s166 + $0x40] sm:$0xff]
      %v183 = vld [vmem:[%s166 + $0x48] sm:$0xff]
      %v184 = vld [vmem:[%s166 + $0x50] sm:$0xff]
      %v185 = vld [vmem:[%s166 + $0x58] sm:$0xff]
      %v186 = vld [vmem:[%s166 + $0x60] sm:$0xff]
      %v187 = vld [vmem:[%s166 + $0x68] sm:$0xff]
      %v188 = vld [vmem:[%s166 + $0x70] sm:$0xff]
      %v189 = vld [vmem:[%s166 + $0x78] sm:$0xff]
      %v190 = vld [vmem:[%s166 + $0x80] sm:$0xff]
      %v191 = vld [vmem:[%s166 + $0x88] sm:$0xff]
      %v192 = vld [vmem:[%s166 + $0x90] sm:$0xff]
      %v193 = vld [vmem:[%s166 + $0x98] sm:$0xff]
      %v194 = vld [vmem:[%s166 + $0xa0] sm:$0xff]
      %v195 = vld [vmem:[%s166 + $0xa8] sm:$0xff]
      %v196 = vld [vmem:[%s166 + $0xb0] sm:$0xff]
      %v197 = vld [vmem:[%s166 + $0xb8] sm:$0xff]
      %v198 = vld [vmem:[%s166 + $0xc0] sm:$0xff]
      %v199 = vld [vmem:[%s166 + $0xc8] sm:$0xff]
      %v200 = vld [vmem:[%s166 + $0xd0] sm:$0xff]
      %v201 = vld [vmem:[%s166 + $0xd8] sm:$0xff]
      %v202 = vld [vmem:[%s166 + $0xe0] sm:$0xff]
      %v203 = vld [vmem:[%s166 + $0xe8] sm:$0xff]
      %v204 = vld [vmem:[%s166 + $0xf0] sm:$0xff]
      %v205 = vld [vmem:[%s166 + $0xf8] sm:$0xff]
      %v206 = vld [vmem:[%s166 + $0x100] sm:$0xff]
      %v207 = vld [vmem:[%s166 + $0x108] sm:$0xff]
      %v208 = vld [vmem:[%s166 + $0x110] sm:$0xff]
      %v209 = vld [vmem:[%s166 + $0x118] sm:$0xff]
      %v210 = vld [vmem:[%s166 + $0x120] sm:$0xff]
      %v211 = vld [vmem:[%s166 + $0x128] sm:$0xff]
      %v212 = vld [vmem:[%s166 + $0x130] sm:$0xff]
      %v213 = vld [vmem:[%s166 + $0x138] sm:$0xff]
      %v214 = vld [vmem:[%s166 + $0x140] sm:$0xff]
      %v215 = vld [vmem:[%s166 + $0x148] sm:$0xff]
      %v216 = vld [vmem:[%s166 + $0x150] sm:$0xff]
      %v217 = vld [vmem:[%s166 + $0x158] sm:$0xff]
      %v218 = vld [vmem:[%s166 + $0x160] sm:$0xff]
      %v219 = vld [vmem:[%s166 + $0x168] sm:$0xff]
      %v220 = vld [vmem:[%s166 + $0x170] sm:$0xff]
      %v221 = vld [vmem:[%s166 + $0x178] sm:$0xff]
      %v222 = vld [vmem:[%s166 + $0x180] sm:$0xff]
      %v223 = vld [vmem:[%s166 + $0x188] sm:$0xff]
      %v224 = vld [vmem:[%s166 + $0x190] sm:$0xff]
      %v225 = vld [vmem:[%s166 + $0x198] sm:$0xff]
      %v226 = vld [vmem:[%s166 + $0x1a0] sm:$0xff]
      %v227 = vld [vmem:[%s166 + $0x1a8] sm:$0xff]
      %v228 = vld [vmem:[%s166 + $0x1b0] sm:$0xff]
      %v229 = vld [vmem:[%s166 + $0x1b8] sm:$0xff]
      %v230 = vld [vmem:[%s166 + $0x1c0] sm:$0xff]
      %v231 = vld [vmem:[%s166 + $0x1c8] sm:$0xff]
      %v232 = vld [vmem:[%s166 + $0x1d0] sm:$0xff]
      %v233 = vld [vmem:[%s166 + $0x1d8] sm:$0xff]
      %v234 = vld [vmem:[%s166 + $0x1e0] sm:$0xff]
      %v235 = vld [vmem:[%s166 + $0x1e8] sm:$0xff]
      %v236 = vld [vmem:[%s166 + $0x1f0] sm:$0xff]
      %v237 = vld [vmem:[%s166 + $0x1f8] sm:$0xff]
      %v238 = vld [vmem:[%s1] sm:$0xff]
      %v239 = vld [vmem:[%s1 + $0x8] sm:$0xff]
      %v240 = vld [vmem:[%s1 + $0x10] sm:$0xff]
      %v241 = vld [vmem:[%s1 + $0x18] sm:$0xff]
      %v242 = vld [vmem:[%s1 + $0x20] sm:$0xff]
      %v243 = vld [vmem:[%s1 + $0x28] sm:$0xff]
      %v244 = vld [vmem:[%s1 + $0x30] sm:$0xff]
      %v245 = vld [vmem:[%s1 + $0x38] sm:$0xff]
      %v246 = vld [vmem:[%s1 + $0x40] sm:$0xff]
      %v247 = vld [vmem:[%s1 + $0x48] sm:$0xff]
      %v248 = vld [vmem:[%s1 + $0x50] sm:$0xff]
      %v249 = vld [vmem:[%s1 + $0x58] sm:$0xff]
      %v250 = vld [vmem:[%s1 + $0x60] sm:$0xff]
      %v251 = vld [vmem:[%s1 + $0x68] sm:$0xff]
      %v252 = vld [vmem:[%s1 + $0x70] sm:$0xff]
      %v253 = vld [vmem:[%s1 + $0x78] sm:$0xff]
      %v254 = vld [vmem:[%s2] sm:$0x1]
      %v256 = vperm.slane %v254, 0
      %258 = vmatpush.msra.mxu0 %v253
      %259 = vmatpush.msra.mxu0 %v252
      %260 = vmatpush.msra.mxu0 %v251
      %261 = vmatpush.msra.mxu0 %v250
      %262 = vmatpush.msra.mxu0 %v249
      %263 = vmatpush.msra.mxu0 %v248
      %264 = vmatpush.msra.mxu0 %v247
      %265 = vmatpush.msra.mxu0 %v246
      %266 = vmatpush.msra.mxu0 %v245
      %267 = vmatpush.msra.mxu0 %v244
      %268 = vmatpush.msra.mxu0 %v243
      %269 = vmatpush.msra.mxu0 %v242
      %270 = vmatpush.msra.mxu0 %v241
      %271 = vmatpush.msra.mxu0 %v240
      %272 = vmatpush.msra.mxu0 %v239
      %273 = vmatpush.msra.mxu0 %v238
      %274 = vmatmul.f32.gmra.mxu0 %v174
      %v275 = vpop.f32.mrf.mxu0
      %v276 = vadd.f32 %v256, %v275
      %277 = vmatmul.f32.gmra.mxu0 %v175
      %v278 = vpop.f32.mrf.mxu0
      %v279 = vadd.f32 %v256, %v278
      %280 = vmatmul.f32.gmra.mxu0 %v176
      %v281 = vpop.f32.mrf.mxu0
      %v282 = vadd.f32 %v256, %v281
      %283 = vmatmul.f32.gmra.mxu0 %v177
      %v284 = vpop.f32.mrf.mxu0
      %v285 = vadd.f32 %v256, %v284
      %286 = vmatmul.f32.gmra.mxu0 %v178
      %v287 = vpop.f32.mrf.mxu0
      %v288 = vadd.f32 %v256, %v287
      %289 = vmatmul.f32.gmra.mxu0 %v179
      %v290 = vpop.f32.mrf.mxu0
      %v291 = vadd.f32 %v256, %v290
      %292 = vmatmul.f32.gmra.mxu0 %v180
      %v293 = vpop.f32.mrf.mxu0
      %v294 = vadd.f32 %v256, %v293
      %295 = vmatmul.f32.gmra.mxu0 %v181
      %v296 = vpop.f32.mrf.mxu0
      %v297 = vadd.f32 %v256, %v296
      %298 = vmatmul.f32.gmra.mxu0 %v182
      %v299 = vpop.f32.mrf.mxu0
      %v300 = vadd.f32 %v256, %v299
      %301 = vmatmul.f32.gmra.mxu0 %v183
      %v302 = vpop.f32.mrf.mxu0
      %v303 = vadd.f32 %v256, %v302
      %304 = vmatmul.f32.gmra.mxu0 %v184
      %v305 = vpop.f32.mrf.mxu0
      %v306 = vadd.f32 %v256, %v305
      %307 = vmatmul.f32.gmra.mxu0 %v185
      %v308 = vpop.f32.mrf.mxu0
      %v309 = vadd.f32 %v256, %v308
      %310 = vmatmul.f32.gmra.mxu0 %v186
      %v311 = vpop.f32.mrf.mxu0
      %v312 = vadd.f32 %v256, %v311
      %313 = vmatmul.f32.gmra.mxu0 %v187
      %v314 = vpop.f32.mrf.mxu0
      %v315 = vadd.f32 %v256, %v314
      %316 = vmatmul.f32.gmra.mxu0 %v188
      %v317 = vpop.f32.mrf.mxu0
      %v318 = vadd.f32 %v256, %v317
      %319 = vmatmul.f32.gmra.mxu0 %v189
      %v320 = vpop.f32.mrf.mxu0
      %v321 = vadd.f32 %v256, %v320
      %322 = vmatmul.f32.gmra.mxu0 %v190
      %v323 = vpop.f32.mrf.mxu0
      %v324 = vadd.f32 %v256, %v323
      %325 = vmatmul.f32.gmra.mxu0 %v191
      %v326 = vpop.f32.mrf.mxu0
      %v327 = vadd.f32 %v256, %v326
      %328 = vmatmul.f32.gmra.mxu0 %v192
      %v329 = vpop.f32.mrf.mxu0
      %v330 = vadd.f32 %v256, %v329
      %331 = vmatmul.f32.gmra.mxu0 %v193
      %v332 = vpop.f32.mrf.mxu0
      %v333 = vadd.f32 %v256, %v332
      %334 = vmatmul.f32.gmra.mxu0 %v194
      %v335 = vpop.f32.mrf.mxu0
      %v336 = vadd.f32 %v256, %v335
      %337 = vmatmul.f32.gmra.mxu0 %v195
      %v338 = vpop.f32.mrf.mxu0
      %v339 = vadd.f32 %v256, %v338
      %340 = vmatmul.f32.gmra.mxu0 %v196
      %v341 = vpop.f32.mrf.mxu0
      %v342 = vadd.f32 %v256, %v341
      %343 = vmatmul.f32.gmra.mxu0 %v197
      %v344 = vpop.f32.mrf.mxu0
      %v345 = vadd.f32 %v256, %v344
      %346 = vmatmul.f32.gmra.mxu0 %v198
      %v347 = vpop.f32.mrf.mxu0
      %v348 = vadd.f32 %v256, %v347
      %349 = vmatmul.f32.gmra.mxu0 %v199
      %v350 = vpop.f32.mrf.mxu0
      %v351 = vadd.f32 %v256, %v350
      %352 = vmatmul.f32.gmra.mxu0 %v200
      %v353 = vpop.f32.mrf.mxu0
      %v354 = vadd.f32 %v256, %v353
      %355 = vmatmul.f32.gmra.mxu0 %v201
      %v356 = vpop.f32.mrf.mxu0
      %v357 = vadd.f32 %v256, %v356
      %358 = vmatmul.f32.gmra.mxu0 %v202
      %v359 = vpop.f32.mrf.mxu0
      %v360 = vadd.f32 %v256, %v359
      %361 = vmatmul.f32.gmra.mxu0 %v203
      %v362 = vpop.f32.mrf.mxu0
      %v363 = vadd.f32 %v256, %v362
      %364 = vmatmul.f32.gmra.mxu0 %v204
      %v365 = vpop.f32.mrf.mxu0
      %v366 = vadd.f32 %v256, %v365
      %367 = vmatmul.f32.gmra.mxu0 %v205
      %v368 = vpop.f32.mrf.mxu0
      %v369 = vadd.f32 %v256, %v368
      %370 = vmatmul.f32.gmra.mxu0 %v206
      %v371 = vpop.f32.mrf.mxu0
      %v372 = vadd.f32 %v256, %v371
      %373 = vmatmul.f32.gmra.mxu0 %v207
      %v374 = vpop.f32.mrf.mxu0
      %v375 = vadd.f32 %v256, %v374
      %376 = vmatmul.f32.gmra.mxu0 %v208
      %v377 = vpop.f32.mrf.mxu0
      %v378 = vadd.f32 %v256, %v377
      %379 = vmatmul.f32.gmra.mxu0 %v209
      %v380 = vpop.f32.mrf.mxu0
      %v381 = vadd.f32 %v256, %v380
      %382 = vmatmul.f32.gmra.mxu0 %v210
      %v383 = vpop.f32.mrf.mxu0
      %v384 = vadd.f32 %v256, %v383
      %385 = vmatmul.f32.gmra.mxu0 %v211
      %v386 = vpop.f32.mrf.mxu0
      %v387 = vadd.f32 %v256, %v386
      %388 = vmatmul.f32.gmra.mxu0 %v212
      %v389 = vpop.f32.mrf.mxu0
      %v390 = vadd.f32 %v256, %v389
      %391 = vmatmul.f32.gmra.mxu0 %v213
      %v392 = vpop.f32.mrf.mxu0
      %v393 = vadd.f32 %v256, %v392
      %394 = vmatmul.f32.gmra.mxu0 %v214
      %v395 = vpop.f32.mrf.mxu0
      %v396 = vadd.f32 %v256, %v395
      %397 = vmatmul.f32.gmra.mxu0 %v215
      %v398 = vpop.f32.mrf.mxu0
      %v399 = vadd.f32 %v256, %v398
      %400 = vmatmul.f32.gmra.mxu0 %v216
      %v401 = vpop.f32.mrf.mxu0
      %v402 = vadd.f32 %v256, %v401
      %403 = vmatmul.f32.gmra.mxu0 %v217
      %v404 = vpop.f32.mrf.mxu0
      %v405 = vadd.f32 %v256, %v404
      %406 = vmatmul.f32.gmra.mxu0 %v218
      %v407 = vpop.f32.mrf.mxu0
      %v408 = vadd.f32 %v256, %v407
      %409 = vmatmul.f32.gmra.mxu0 %v219
      %v410 = vpop.f32.mrf.mxu0
      %v411 = vadd.f32 %v256, %v410
      %412 = vmatmul.f32.gmra.mxu0 %v220
      %v413 = vpop.f32.mrf.mxu0
      %v414 = vadd.f32 %v256, %v413
      %415 = vmatmul.f32.gmra.mxu0 %v221
      %v416 = vpop.f32.mrf.mxu0
      %v417 = vadd.f32 %v256, %v416
      %418 = vmatmul.f32.gmra.mxu0 %v222
      %v419 = vpop.f32.mrf.mxu0
      %v420 = vadd.f32 %v256, %v419
      %421 = vmatmul.f32.gmra.mxu0 %v223
      %v422 = vpop.f32.mrf.mxu0
      %v423 = vadd.f32 %v256, %v422
      %424 = vmatmul.f32.gmra.mxu0 %v224
      %v425 = vpop.f32.mrf.mxu0
      %v426 = vadd.f32 %v256, %v425
      %427 = vmatmul.f32.gmra.mxu0 %v225
      %v428 = vpop.f32.mrf.mxu0
      %v429 = vadd.f32 %v256, %v428
      %430 = vmatmul.f32.gmra.mxu0 %v226
      %v431 = vpop.f32.mrf.mxu0
      %v432 = vadd.f32 %v256, %v431
      %433 = vmatmul.f32.gmra.mxu0 %v227
      %v434 = vpop.f32.mrf.mxu0
      %v435 = vadd.f32 %v256, %v434
      %436 = vmatmul.f32.gmra.mxu0 %v228
      %v437 = vpop.f32.mrf.mxu0
      %v438 = vadd.f32 %v256, %v437
      %439 = vmatmul.f32.gmra.mxu0 %v229
      %v440 = vpop.f32.mrf.mxu0
      %v441 = vadd.f32 %v256, %v440
      %442 = vmatmul.f32.gmra.mxu0 %v230
      %v443 = vpop.f32.mrf.mxu0
      %v444 = vadd.f32 %v256, %v443
      %445 = vmatmul.f32.gmra.mxu0 %v231
      %v446 = vpop.f32.mrf.mxu0
      %v447 = vadd.f32 %v256, %v446
      %448 = vmatmul.f32.gmra.mxu0 %v232
      %v449 = vpop.f32.mrf.mxu0
      %v450 = vadd.f32 %v256, %v449
      %451 = vmatmul.f32.gmra.mxu0 %v233
      %v452 = vpop.f32.mrf.mxu0
      %v453 = vadd.f32 %v256, %v452
      %454 = vmatmul.f32.gmra.mxu0 %v234
      %v455 = vpop.f32.mrf.mxu0
      %v456 = vadd.f32 %v256, %v455
      %457 = vmatmul.f32.gmra.mxu0 %v235
      %v458 = vpop.f32.mrf.mxu0
      %v459 = vadd.f32 %v256, %v458
      %460 = vmatmul.f32.gmra.mxu0 %v236
      %v461 = vpop.f32.mrf.mxu0
      %v462 = vadd.f32 %v256, %v461
      %463 = vmatmul.f32.gmra.mxu0 %v237
      %v464 = vpop.f32.mrf.mxu0
      %v465 = vadd.f32 %v256, %v464
      %466 = vdwg.mxu0
      %v467 = vmax.f32 %v276, 0.0
      %v468 = vmax.f32 %v279, 0.0
      %v469 = vmax.f32 %v282, 0.0
      %v470 = vmax.f32 %v285, 0.0
      %v471 = vmax.f32 %v288, 0.0
      %v472 = vmax.f32 %v291, 0.0
      %v473 = vmax.f32 %v294, 0.0
      %v474 = vmax.f32 %v297, 0.0
      %v475 = vmax.f32 %v300, 0.0
      %v476 = vmax.f32 %v303, 0.0
      %v477 = vmax.f32 %v306, 0.0
      %v478 = vmax.f32 %v309, 0.0
      %v479 = vmax.f32 %v312, 0.0
      %v480 = vmax.f32 %v315, 0.0
      %v481 = vmax.f32 %v318, 0.0
      %v482 = vmax.f32 %v321, 0.0
      %v483 = vmax.f32 %v324, 0.0
      %v484 = vmax.f32 %v327, 0.0
      %v485 = vmax.f32 %v330, 0.0
      %v486 = vmax.f32 %v333, 0.0
      %v487 = vmax.f32 %v336, 0.0
      %v488 = vmax.f32 %v339, 0.0
      %v489 = vmax.f32 %v342, 0.0
      %v490 = vmax.f32 %v345, 0.0
      %v491 = vmax.f32 %v348, 0.0
      %v492 = vmax.f32 %v351, 0.0
      %v493 = vmax.f32 %v354, 0.0
      %v494 = vmax.f32 %v357, 0.0
      %v495 = vmax.f32 %v360, 0.0
      %v496 = vmax.f32 %v363, 0.0
      %v497 = vmax.f32 %v366, 0.0
      %v498 = vmax.f32 %v369, 0.0
      %v499 = vmax.f32 %v372, 0.0
      %v500 = vmax.f32 %v375, 0.0
      %v501 = vmax.f32 %v378, 0.0
      %v502 = vmax.f32 %v381, 0.0
      %v503 = vmax.f32 %v384, 0.0
      %v504 = vmax.f32 %v387, 0.0
      %v505 = vmax.f32 %v390, 0.0
      %v506 = vmax.f32 %v393, 0.0
      %v507 = vmax.f32 %v396, 0.0
      %v508 = vmax.f32 %v399, 0.0
      %v509 = vmax.f32 %v402, 0.0
      %v510 = vmax.f32 %v405, 0.0
      %v511 = vmax.f32 %v408, 0.0
      %v512 = vmax.f32 %v411, 0.0
      %v513 = vmax.f32 %v414, 0.0
      %v514 = vmax.f32 %v417, 0.0
      %v515 = vmax.f32 %v420, 0.0
      %v516 = vmax.f32 %v423, 0.0
      %v517 = vmax.f32 %v426, 0.0
      %v518 = vmax.f32 %v429, 0.0
      %v519 = vmax.f32 %v432, 0.0
      %v520 = vmax.f32 %v435, 0.0
      %v521 = vmax.f32 %v438, 0.0
      %v522 = vmax.f32 %v441, 0.0
      %v523 = vmax.f32 %v444, 0.0
      %v524 = vmax.f32 %v447, 0.0
      %v525 = vmax.f32 %v450, 0.0
      %v526 = vmax.f32 %v453, 0.0
      %v527 = vmax.f32 %v456, 0.0
      %v528 = vmax.f32 %v459, 0.0
      %v529 = vmax.f32 %v462, 0.0
      %v530 = vmax.f32 %v465, 0.0
      %531 = vst [vmem:[%s172] sm:$0xff] %v467
      %532 = vst [vmem:[%s172 + $0x8] sm:$0xff] %v468
      %533 = vst [vmem:[%s172 + $0x10] sm:$0xff] %v469
      %534 = vst [vmem:[%s172 + $0x18] sm:$0xff] %v470
      %535 = vst [vmem:[%s172 + $0x20] sm:$0xff] %v471
      %536 = vst [vmem:[%s172 + $0x28] sm:$0xff] %v472
      %537 = vst [vmem:[%s172 + $0x30] sm:$0xff] %v473
      %538 = vst [vmem:[%s172 + $0x38] sm:$0xff] %v474
      %539 = vst [vmem:[%s172 + $0x40] sm:$0xff] %v475
      %540 = vst [vmem:[%s172 + $0x48] sm:$0xff] %v476
      %541 = vst [vmem:[%s172 + $0x50] sm:$0xff] %v477
      %542 = vst [vmem:[%s172 + $0x58] sm:$0xff] %v478
      %543 = vst [vmem:[%s172 + $0x60] sm:$0xff] %v479
      %544 = vst [vmem:[%s172 + $0x68] sm:$0xff] %v480
      %545 = vst [vmem:[%s172 + $0x70] sm:$0xff] %v481
      %546 = vst [vmem:[%s172 + $0x78] sm:$0xff] %v482
      %547 = vst [vmem:[%s172 + $0x80] sm:$0xff] %v483
      %548 = vst [vmem:[%s172 + $0x88] sm:$0xff] %v484
      %549 = vst [vmem:[%s172 + $0x90] sm:$0xff] %v485
      %550 = vst [vmem:[%s172 + $0x98] sm:$0xff] %v486
      %551 = vst [vmem:[%s172 + $0xa0] sm:$0xff] %v487
      %552 = vst [vmem:[%s172 + $0xa8] sm:$0xff] %v488
      %553 = vst [vmem:[%s172 + $0xb0] sm:$0xff] %v489
      %554 = vst [vmem:[%s172 + $0xb8] sm:$0xff] %v490
      %555 = vst [vmem:[%s172 + $0xc0] sm:$0xff] %v491
      %556 = vst [vmem:[%s172 + $0xc8] sm:$0xff] %v492
      %557 = vst [vmem:[%s172 + $0xd0] sm:$0xff] %v493
      %558 = vst [vmem:[%s172 + $0xd8] sm:$0xff] %v494
      %559 = vst [vmem:[%s172 + $0xe0] sm:$0xff] %v495
      %560 = vst [vmem:[%s172 + $0xe8] sm:$0xff] %v496
      %561 = vst [vmem:[%s172 + $0xf0] sm:$0xff] %v497
      %562 = vst [vmem:[%s172 + $0xf8] sm:$0xff] %v498
      %563 = vst [vmem:[%s172 + $0x100] sm:$0xff] %v499
      %564 = vst [vmem:[%s172 + $0x108] sm:$0xff] %v500
      %565 = vst [vmem:[%s172 + $0x110] sm:$0xff] %v501
      %566 = vst [vmem:[%s172 + $0x118] sm:$0xff] %v502
      %567 = vst [vmem:[%s172 + $0x120] sm:$0xff] %v503
      %568 = vst [vmem:[%s172 + $0x128] sm:$0xff] %v504
      %569 = vst [vmem:[%s172 + $0x130] sm:$0xff] %v505
      %570 = vst [vmem:[%s172 + $0x138] sm:$0xff] %v506
      %571 = vst [vmem:[%s172 + $0x140] sm:$0xff] %v507
      %572 = vst [vmem:[%s172 + $0x148] sm:$0xff] %v508
      %573 = vst [vmem:[%s172 + $0x150] sm:$0xff] %v509
      %574 = vst [vmem:[%s172 + $0x158] sm:$0xff] %v510
      %575 = vst [vmem:[%s172 + $0x160] sm:$0xff] %v511
      %576 = vst [vmem:[%s172 + $0x168] sm:$0xff] %v512
      %577 = vst [vmem:[%s172 + $0x170] sm:$0xff] %v513
      %578 = vst [vmem:[%s172 + $0x178] sm:$0xff] %v514
      %579 = vst [vmem:[%s172 + $0x180] sm:$0xff] %v515
      %580 = vst [vmem:[%s172 + $0x188] sm:$0xff] %v516
      %581 = vst [vmem:[%s172 + $0x190] sm:$0xff] %v517
      %582 = vst [vmem:[%s172 + $0x198] sm:$0xff] %v518
      %583 = vst [vmem:[%s172 + $0x1a0] sm:$0xff] %v519
      %584 = vst [vmem:[%s172 + $0x1a8] sm:$0xff] %v520
      %585 = vst [vmem:[%s172 + $0x1b0] sm:$0xff] %v521
      %586 = vst [vmem:[%s172 + $0x1b8] sm:$0xff] %v522
      %587 = vst [vmem:[%s172 + $0x1c0] sm:$0xff] %v523
      %588 = vst [vmem:[%s172 + $0x1c8] sm:$0xff] %v524
      %589 = vst [vmem:[%s172 + $0x1d0] sm:$0xff] %v525
      %590 = vst [vmem:[%s172 + $0x1d8] sm:$0xff] %v526
      %591 = vst [vmem:[%s172 + $0x1e0] sm:$0xff] %v527
      %592 = vst [vmem:[%s172 + $0x1e8] sm:$0xff] %v528
      %593 = vst [vmem:[%s172 + $0x1f0] sm:$0xff] %v529
      %594 = vst [vmem:[%s172 + $0x1f8] sm:$0xff] %v530
      %s595 = smul.u32 64, %s14
      %p596 = scmp.lt.s32.totalorder %s595, 127
      %s597 = scalar_select %p596, %s595, 127
      %s598 = smul.addr %s597, 8
      %s599 = scalar_lea.vmem %s3, %s598
      // Predicated region
      $region33: #{flow_model_forward.3} parent=31 // pred_check
        %p600 = pneg %p100
      $region34: #{flow_model_forward.3} parent=31 // pred_check_branch
        %602 = sbr.rel (%p600) target = $region36
      $region35: #{flow_model_forward.3} parent=31 // pred_region
        %s603 = smul.u32 64, %s14
      $region36: #{flow_model_forward.3} parent=31 // pred_fallthru
        _
    $region32: #{flow_model_forward.3} parent=5 // pred_fallthru
      _
    %p604 = scmp.le.s32.totalorder 2, %s9
    // Predicated region
    $region37: #{flow_model_forward.3} parent=5 // pred_check
      %p605 = pneg %p604
    $region38: #{flow_model_forward.3} parent=5 // pred_check_branch
      %607 = sbr.rel (%p605) target = $region40
    $region39: #{flow_model_forward.3} parent=5 // pred_region
      %s608 = ssub.s32 %s9, 2
      // Predicated region
      $region41: #{flow_model_forward.3} parent=39 // pred_check
        %p609 = pneg %p106
      $region42: #{flow_model_forward.3} parent=39 // pred_check_branch
        %611 = sbr.rel (%p609) target = $region44
      $region43: #{flow_model_forward.3} parent=39 // pred_region
        %s612 = smul.u32 64, %s15
        %p613 = scmp.lt.s32.totalorder %s612, 127
        %s614 = scalar_select %p613, %s612, 127
        %s615 = smul.addr %s614, 8
        %s616 = scalar_lea.vmem %s3, %s615
      $region44: #{flow_model_forward.3} parent=39 // pred_fallthru
        _
    $region40: #{flow_model_forward.3} parent=5 // pred_fallthru
      _
  $region6: #{flow_model_forward.3} parent=0 // loop_footer
    %s13 = sadd.s32 1, %s9
  $region7: #{flow_model_forward.3} parent=0 // loop_footer_branch
    %8 = sbr.rel target = $region3
  $region8: #{flow_model_forward.3} parent=0 // loop_exit
    _

// kernel: flow_model_forward.4
$region0: #{flow_model_forward.4}
  #allocation0 [shape = 'u32[]', space=smem, size = 0x4, offset = 0x4, fixed_abs, tag = 'smem constant byte address 0x4 - core index']
  #allocation1 [shape = 'u32[72,128]{1,0:T(1,128)}', space=vmem, size = 0x9000, scoped, tag = 'internal scratch']
  %s0 = inlined_call_operand.vmem [shape: f32[256,256], index: 0, kind: input, shape index: {}]
  %s1 = inlined_call_operand.vmem [shape: f32[256,128], index: 1, kind: input, shape index: {}]
  %s2 = inlined_call_operand.vmem [shape: f32[1,128], index: 2, kind: input, shape index: {}]
  %s3 = inlined_call_operand.vmem [shape: f32[256,128], index: 3, kind: output, shape index: {}]
  %s4 = sld [smem:[#allocation0]]
  $region22: #{flow_model_forward.4} parent=0
    _
  %s6 = ssub.s32 1, %s4
  %s7 = scalar_select 0, %s6, %s4
  // Predicated region
  $region2: #{flow_model_forward.4} parent=0 // pred_check
    _
  $region3: #{flow_model_forward.4} parent=0 // pred_check_branch
    %9 = sbr.rel (0) target = $region5
  $region4: #{flow_model_forward.4} parent=0 // pred_region
    _
  $region5: #{flow_model_forward.4} parent=0 // pred_fallthru
    _
  // Predicated region
  $region6: #{flow_model_forward.4} parent=0 // pred_check
    _
  $region7: #{flow_model_forward.4} parent=0 // pred_check_branch
    %11 = sbr.rel (0) target = $region9
  $region8: #{flow_model_forward.4} parent=0 // pred_region
    _
  $region9: #{flow_model_forward.4} parent=0 // pred_fallthru
    _
  // Predicated region
  $region10: #{flow_model_forward.4} parent=0 // pred_check
    _
  $region11: #{flow_model_forward.4} parent=0 // pred_check_branch
    %13 = sbr.rel (0) target = $region13
  $region12: #{flow_model_forward.4} parent=0 // pred_region
    _
  $region13: #{flow_model_forward.4} parent=0 // pred_fallthru
    _
  %v14 = vld [vmem:[%s0] sm:$0xff]
  %v15 = vld [vmem:[%s0 + $0x8] sm:$0xff]
  %v16 = vld [vmem:[%s0 + $0x10] sm:$0xff]
  %v17 = vld [vmem:[%s0 + $0x18] sm:$0xff]
  %v18 = vld [vmem:[%s0 + $0x20] sm:$0xff]
  %v19 = vld [vmem:[%s0 + $0x28] sm:$0xff]
  %v20 = vld [vmem:[%s0 + $0x30] sm:$0xff]
  %v21 = vld [vmem:[%s0 + $0x38] sm:$0xff]
  %v22 = vld [vmem:[%s0 + $0x40] sm:$0xff]
  %v23 = vld [vmem:[%s0 + $0x48] sm:$0xff]
  %v24 = vld [vmem:[%s0 + $0x50] sm:$0xff]
  %v25 = vld [vmem:[%s0 + $0x58] sm:$0xff]
  %v26 = vld [vmem:[%s0 + $0x60] sm:$0xff]
  %v27 = vld [vmem:[%s0 + $0x68] sm:$0xff]
  %v28 = vld [vmem:[%s0 + $0x70] sm:$0xff]
  %v29 = vld [vmem:[%s0 + $0x78] sm:$0xff]
  %v30 = vld [vmem:[%s0 + $0x80] sm:$0xff]
  %v31 = vld [vmem:[%s0 + $0x88] sm:$0xff]
  %v32 = vld [vmem:[%s0 + $0x90] sm:$0xff]
  %v33 = vld [vmem:[%s0 + $0x98] sm:$0xff]
  %v34 = vld [vmem:[%s0 + $0xa0] sm:$0xff]
  %v35 = vld [vmem:[%s0 + $0xa8] sm:$0xff]
  %v36 = vld [vmem:[%s0 + $0xb0] sm:$0xff]
  %v37 = vld [vmem:[%s0 + $0xb8] sm:$0xff]
  %v38 = vld [vmem:[%s0 + $0xc0] sm:$0xff]
  %v39 = vld [vmem:[%s0 + $0xc8] sm:$0xff]
  %v40 = vld [vmem:[%s0 + $0xd0] sm:$0xff]
  %v41 = vld [vmem:[%s0 + $0xd8] sm:$0xff]
  %v42 = vld [vmem:[%s0 + $0xe0] sm:$0xff]
  %v43 = vld [vmem:[%s0 + $0xe8] sm:$0xff]
  %v44 = vld [vmem:[%s0 + $0xf0] sm:$0xff]
  %v45 = vld [vmem:[%s0 + $0xf8] sm:$0xff]
  %v46 = vld [vmem:[%s0 + $0x100] sm:$0xff]
  %v47 = vld [vmem:[%s0 + $0x108] sm:$0xff]
  %v48 = vld [vmem:[%s0 + $0x110] sm:$0xff]
  %v49 = vld [vmem:[%s0 + $0x118] sm:$0xff]
  %v50 = vld [vmem:[%s0 + $0x120] sm:$0xff]
  %v51 = vld [vmem:[%s0 + $0x128] sm:$0xff]
  %v52 = vld [vmem:[%s0 + $0x130] sm:$0xff]
  %v53 = vld [vmem:[%s0 + $0x138] sm:$0xff]
  %v54 = vld [vmem:[%s0 + $0x140] sm:$0xff]
  %v55 = vld [vmem:[%s0 + $0x148] sm:$0xff]
  %v56 = vld [vmem:[%s0 + $0x150] sm:$0xff]
  %v57 = vld [vmem:[%s0 + $0x158] sm:$0xff]
  %v58 = vld [vmem:[%s0 + $0x160] sm:$0xff]
  %v59 = vld [vmem:[%s0 + $0x168] sm:$0xff]
  %v60 = vld [vmem:[%s0 + $0x170] sm:$0xff]
  %v61 = vld [vmem:[%s0 + $0x178] sm:$0xff]
  %v62 = vld [vmem:[%s0 + $0x180] sm:$0xff]
  %v63 = vld [vmem:[%s0 + $0x188] sm:$0xff]
  %v64 = vld [vmem:[%s0 + $0x190] sm:$0xff]
  %v65 = vld [vmem:[%s0 + $0x198] sm:$0xff]
  %v66 = vld [vmem:[%s0 + $0x1a0] sm:$0xff]
  %v67 = vld [vmem:[%s0 + $0x1a8] sm:$0xff]
  %v68 = vld [vmem:[%s0 + $0x1b0] sm:$0xff]
  %v69 = vld [vmem:[%s0 + $0x1b8] sm:$0xff]
  %v70 = vld [vmem:[%s0 + $0x1c0] sm:$0xff]
  %v71 = vld [vmem:[%s0 + $0x1c8] sm:$0xff]
  %v72 = vld [vmem:[%s0 + $0x1d0] sm:$0xff]
  %v73 = vld [vmem:[%s0 + $0x1d8] sm:$0xff]
  %v74 = vld [vmem:[%s0 + $0x1e0] sm:$0xff]
  %v75 = vld [vmem:[%s0 + $0x1e8] sm:$0xff]
  %v76 = vld [vmem:[%s0 + $0x1f0] sm:$0xff]
  %v77 = vld [vmem:[%s0 + $0x1f8] sm:$0xff]
  %v78 = vld [vmem:[%s1] sm:$0xff]
  %v79 = vld [vmem:[%s1 + $0x8] sm:$0xff]
  %v80 = vld [vmem:[%s1 + $0x10] sm:$0xff]
  %v81 = vld [vmem:[%s1 + $0x18] sm:$0xff]
  %v82 = vld [vmem:[%s1 + $0x20] sm:$0xff]
  %v83 = vld [vmem:[%s1 + $0x28] sm:$0xff]
  %v84 = vld [vmem:[%s1 + $0x30] sm:$0xff]
  %v85 = vld [vmem:[%s1 + $0x38] sm:$0xff]
  %v86 = vld [vmem:[%s1 + $0x40] sm:$0xff]
  %v87 = vld [vmem:[%s1 + $0x48] sm:$0xff]
  %v88 = vld [vmem:[%s1 + $0x50] sm:$0xff]
  %v89 = vld [vmem:[%s1 + $0x58] sm:$0xff]
  %v90 = vld [vmem:[%s1 + $0x60] sm:$0xff]
  %v91 = vld [vmem:[%s1 + $0x68] sm:$0xff]
  %v92 = vld [vmem:[%s1 + $0x70] sm:$0xff]
  %v93 = vld [vmem:[%s1 + $0x78] sm:$0xff]
  %v94 = vld [vmem:[%s1 + $0x80] sm:$0xff]
  %v95 = vld [vmem:[%s1 + $0x88] sm:$0xff]
  %v96 = vld [vmem:[%s1 + $0x90] sm:$0xff]
  %v97 = vld [vmem:[%s1 + $0x98] sm:$0xff]
  %v98 = vld [vmem:[%s1 + $0xa0] sm:$0xff]
  %v99 = vld [vmem:[%s1 + $0xa8] sm:$0xff]
  %v100 = vld [vmem:[%s1 + $0xb0] sm:$0xff]
  %v101 = vld [vmem:[%s1 + $0xb8] sm:$0xff]
  %v102 = vld [vmem:[%s1 + $0xc0] sm:$0xff]
  %v103 = vld [vmem:[%s1 + $0xc8] sm:$0xff]
  %v104 = vld [vmem:[%s1 + $0xd0] sm:$0xff]
  %v105 = vld [vmem:[%s1 + $0xd8] sm:$0xff]
  %v106 = vld [vmem:[%s1 + $0xe0] sm:$0xff]
  %v107 = vld [vmem:[%s1 + $0xe8] sm:$0xff]
  %v108 = vld [vmem:[%s1 + $0xf0] sm:$0xff]
  %v109 = vld [vmem:[%s1 + $0xf8] sm:$0xff]
  %v110 = vld [vmem:[%s2] sm:$0x1]
  %v112 = vperm.slane %v110, 0
  %114 = vmatpush.msra.mxu0 %v93
  %115 = vmatpush.msra.mxu0 %v92
  %116 = vmatpush.msra.mxu0 %v91
  %117 = vmatpush.msra.mxu0 %v90
  %118 = vmatpush.msra.mxu0 %v89
  %119 = vmatpush.msra.mxu0 %v88
  %120 = vmatpush.msra.mxu0 %v87
  %121 = vmatpush.msra.mxu0 %v86
  %122 = vmatpush.msra.mxu0 %v85
  %123 = vmatpush.msra.mxu0 %v84
  %124 = vmatpush.msra.mxu0 %v83
  %125 = vmatpush.msra.mxu0 %v82
  %126 = vmatpush.msra.mxu0 %v81
  %127 = vmatpush.msra.mxu0 %v80
  %128 = vmatpush.msra.mxu0 %v79
  %129 = vmatpush.msra.mxu0 %v78
  %130 = vmatmul.f32.gmra.mxu0 %v14
  %v131 = vpop.f32.mrf.mxu0
  %v132 = vadd.f32 %v112, %v131
  %133 = vmatmul.f32.gmra.mxu0 %v16
  %v134 = vpop.f32.mrf.mxu0
  %v135 = vadd.f32 %v112, %v134
  %136 = vmatmul.f32.gmra.mxu0 %v18
  %v137 = vpop.f32.mrf.mxu0
  %v138 = vadd.f32 %v112, %v137
  %139 = vmatmul.f32.gmra.mxu0 %v20
  %v140 = vpop.f32.mrf.mxu0
  %v141 = vadd.f32 %v112, %v140
  %142 = vmatmul.f32.gmra.mxu0 %v22
  %v143 = vpop.f32.mrf.mxu0
  %v144 = vadd.f32 %v112, %v143
  %145 = vmatmul.f32.gmra.mxu0 %v24
  %v146 = vpop.f32.mrf.mxu0
  %v147 = vadd.f32 %v112, %v146
  %148 = vmatmul.f32.gmra.mxu0 %v26
  %v149 = vpop.f32.mrf.mxu0
  %v150 = vadd.f32 %v112, %v149
  %151 = vmatmul.f32.gmra.mxu0 %v28
  %v152 = vpop.f32.mrf.mxu0
  %v153 = vadd.f32 %v112, %v152
  %154 = vmatmul.f32.gmra.mxu0 %v30
  %v155 = vpop.f32.mrf.mxu0
  %v156 = vadd.f32 %v112, %v155
  %157 = vmatmul.f32.gmra.mxu0 %v32
  %v158 = vpop.f32.mrf.mxu0
  %v159 = vadd.f32 %v112, %v158
  %160 = vmatmul.f32.gmra.mxu0 %v34
  %v161 = vpop.f32.mrf.mxu0
  %v162 = vadd.f32 %v112, %v161
  %163 = vmatmul.f32.gmra.mxu0 %v36
  %v164 = vpop.f32.mrf.mxu0
  %v165 = vadd.f32 %v112, %v164
  %166 = vmatmul.f32.gmra.mxu0 %v38
  %v167 = vpop.f32.mrf.mxu0
  %v168 = vadd.f32 %v112, %v167
  %169 = vmatmul.f32.gmra.mxu0 %v40
  %v170 = vpop.f32.mrf.mxu0
  %v171 = vadd.f32 %v112, %v170
  %172 = vmatmul.f32.gmra.mxu0 %v42
  %v173 = vpop.f32.mrf.mxu0
  %v174 = vadd.f32 %v112, %v173
  %175 = vmatmul.f32.gmra.mxu0 %v44
  %v176 = vpop.f32.mrf.mxu0
  %v177 = vadd.f32 %v112, %v176
  %178 = vmatmul.f32.gmra.mxu0 %v46
  %v179 = vpop.f32.mrf.mxu0
  %v180 = vadd.f32 %v112, %v179
  %181 = vmatmul.f32.gmra.mxu0 %v48
  %v182 = vpop.f32.mrf.mxu0
  %v183 = vadd.f32 %v112, %v182
  %184 = vmatmul.f32.gmra.mxu0 %v50
  %v185 = vpop.f32.mrf.mxu0
  %v186 = vadd.f32 %v112, %v185
  %187 = vmatmul.f32.gmra.mxu0 %v52
  %v188 = vpop.f32.mrf.mxu0
  %v189 = vadd.f32 %v112, %v188
  %190 = vmatmul.f32.gmra.mxu0 %v54
  %v191 = vpop.f32.mrf.mxu0
  %v192 = vadd.f32 %v112, %v191
  %193 = vmatmul.f32.gmra.mxu0 %v56
  %v194 = vpop.f32.mrf.mxu0
  %v195 = vadd.f32 %v112, %v194
  %196 = vmatmul.f32.gmra.mxu0 %v58
  %v197 = vpop.f32.mrf.mxu0
  %v198 = vadd.f32 %v112, %v197
  %199 = vmatmul.f32.gmra.mxu0 %v60
  %v200 = vpop.f32.mrf.mxu0
  %v201 = vadd.f32 %v112, %v200
  %202 = vmatmul.f32.gmra.mxu0 %v62
  %v203 = vpop.f32.mrf.mxu0
  %v204 = vadd.f32 %v112, %v203
  %205 = vmatmul.f32.gmra.mxu0 %v64
  %v206 = vpop.f32.mrf.mxu0
  %v207 = vadd.f32 %v112, %v206
  %208 = vmatmul.f32.gmra.mxu0 %v66
  %v209 = vpop.f32.mrf.mxu0
  %v210 = vadd.f32 %v112, %v209
  %211 = vmatmul.f32.gmra.mxu0 %v68
  %v212 = vpop.f32.mrf.mxu0
  %v213 = vadd.f32 %v112, %v212
  %214 = vmatmul.f32.gmra.mxu0 %v70
  %v215 = vpop.f32.mrf.mxu0
  %v216 = vadd.f32 %v112, %v215
  %217 = vmatmul.f32.gmra.mxu0 %v72
  %v218 = vpop.f32.mrf.mxu0
  %v219 = vadd.f32 %v112, %v218
  %220 = vmatmul.f32.gmra.mxu0 %v74
  %v221 = vpop.f32.mrf.mxu0
  %v222 = vadd.f32 %v112, %v221
  %223 = vmatmul.f32.gmra.mxu0 %v76
  %v224 = vpop.f32.mrf.mxu0
  %v225 = vadd.f32 %v112, %v224
  %226 = vdwg.mxu0
  %227 = vmatpush.msra.mxu0 %v109
  %228 = vmatpush.msra.mxu0 %v108
  %229 = vmatpush.msra.mxu0 %v107
  %230 = vmatpush.msra.mxu0 %v106
  %231 = vmatpush.msra.mxu0 %v105
  %232 = vmatpush.msra.mxu0 %v104
  %233 = vmatpush.msra.mxu0 %v103
  %234 = vmatpush.msra.mxu0 %v102
  %235 = vmatpush.msra.mxu0 %v101
  %236 = vmatpush.msra.mxu0 %v100
  %237 = vmatpush.msra.mxu0 %v99
  %238 = vmatpush.msra.mxu0 %v98
  %239 = vmatpush.msra.mxu0 %v97
  %240 = vmatpush.msra.mxu0 %v96
  %241 = vmatpush.msra.mxu0 %v95
  %242 = vmatpush.msra.mxu0 %v94
  %243 = vmatmul.f32.gmra.mxu0 %v15
  %v244 = vpop.f32.mrf.mxu0
  %v245 = vadd.f32 %v132, %v244
  %246 = vmatmul.f32.gmra.mxu0 %v17
  %v247 = vpop.f32.mrf.mxu0
  %v248 = vadd.f32 %v135, %v247
  %249 = vmatmul.f32.gmra.mxu0 %v19
  %v250 = vpop.f32.mrf.mxu0
  %v251 = vadd.f32 %v138, %v250
  %252 = vmatmul.f32.gmra.mxu0 %v21
  %v253 = vpop.f32.mrf.mxu0
  %v254 = vadd.f32 %v141, %v253
  %255 = vmatmul.f32.gmra.mxu0 %v23
  %v256 = vpop.f32.mrf.mxu0
  %v257 = vadd.f32 %v144, %v256
  %258 = vmatmul.f32.gmra.mxu0 %v25
  %v259 = vpop.f32.mrf.mxu0
  %v260 = vadd.f32 %v147, %v259
  %261 = vmatmul.f32.gmra.mxu0 %v27
  %v262 = vpop.f32.mrf.mxu0
  %v263 = vadd.f32 %v150, %v262
  %264 = vmatmul.f32.gmra.mxu0 %v29
  %v265 = vpop.f32.mrf.mxu0
  %v266 = vadd.f32 %v153, %v265
  %267 = vmatmul.f32.gmra.mxu0 %v31
  %v268 = vpop.f32.mrf.mxu0
  %v269 = vadd.f32 %v156, %v268
  %270 = vmatmul.f32.gmra.mxu0 %v33
  %v271 = vpop.f32.mrf.mxu0
  %v272 = vadd.f32 %v159, %v271
  %273 = vmatmul.f32.gmra.mxu0 %v35
  %v274 = vpop.f32.mrf.mxu0
  %v275 = vadd.f32 %v162, %v274
  %276 = vmatmul.f32.gmra.mxu0 %v37
  %v277 = vpop.f32.mrf.mxu0
  %v278 = vadd.f32 %v165, %v277
  %279 = vmatmul.f32.gmra.mxu0 %v39
  %v280 = vpop.f32.mrf.mxu0
  %v281 = vadd.f32 %v168, %v280
  %282 = vmatmul.f32.gmra.mxu0 %v41
  %v283 = vpop.f32.mrf.mxu0
  %v284 = vadd.f32 %v171, %v283
  %285 = vmatmul.f32.gmra.mxu0 %v43
  %v286 = vpop.f32.mrf.mxu0
  %v287 = vadd.f32 %v174, %v286
  %288 = vmatmul.f32.gmra.mxu0 %v45
  %v289 = vpop.f32.mrf.mxu0
  %v290 = vadd.f32 %v177, %v289
  %291 = vmatmul.f32.gmra.mxu0 %v47
  %v292 = vpop.f32.mrf.mxu0
  %v293 = vadd.f32 %v180, %v292
  %294 = vmatmul.f32.gmra.mxu0 %v49
  %v295 = vpop.f32.mrf.mxu0
  %v296 = vadd.f32 %v183, %v295
  %297 = vmatmul.f32.gmra.mxu0 %v51
  %v298 = vpop.f32.mrf.mxu0
  %v299 = vadd.f32 %v186, %v298
  %300 = vmatmul.f32.gmra.mxu0 %v53
  %v301 = vpop.f32.mrf.mxu0
  %v302 = vadd.f32 %v189, %v301
  %303 = vmatmul.f32.gmra.mxu0 %v55
  %v304 = vpop.f32.mrf.mxu0
  %v305 = vadd.f32 %v192, %v304
  %306 = vmatmul.f32.gmra.mxu0 %v57
  %v307 = vpop.f32.mrf.mxu0
  %v308 = vadd.f32 %v195, %v307
  %309 = vmatmul.f32.gmra.mxu0 %v59
  %v310 = vpop.f32.mrf.mxu0
  %v311 = vadd.f32 %v198, %v310
  %312 = vmatmul.f32.gmra.mxu0 %v61
  %v313 = vpop.f32.mrf.mxu0
  %v314 = vadd.f32 %v201, %v313
  %315 = vmatmul.f32.gmra.mxu0 %v63
  %v316 = vpop.f32.mrf.mxu0
  %v317 = vadd.f32 %v204, %v316
  %318 = vmatmul.f32.gmra.mxu0 %v65
  %v319 = vpop.f32.mrf.mxu0
  %v320 = vadd.f32 %v207, %v319
  %321 = vmatmul.f32.gmra.mxu0 %v67
  %v322 = vpop.f32.mrf.mxu0
  %v323 = vadd.f32 %v210, %v322
  %324 = vmatmul.f32.gmra.mxu0 %v69
  %v325 = vpop.f32.mrf.mxu0
  %v326 = vadd.f32 %v213, %v325
  %327 = vmatmul.f32.gmra.mxu0 %v71
  %v328 = vpop.f32.mrf.mxu0
  %v329 = vadd.f32 %v216, %v328
  %330 = vmatmul.f32.gmra.mxu0 %v73
  %v331 = vpop.f32.mrf.mxu0
  %v332 = vadd.f32 %v219, %v331
  %333 = vmatmul.f32.gmra.mxu0 %v75
  %v334 = vpop.f32.mrf.mxu0
  %v335 = vadd.f32 %v222, %v334
  %336 = vmatmul.f32.gmra.mxu0 %v77
  %v337 = vpop.f32.mrf.mxu0
  %v338 = vadd.f32 %v225, %v337
  %339 = vdwg.mxu0
  %v340 = vmax.f32 %v245, 0.0
  %v341 = vmax.f32 %v248, 0.0
  %v342 = vmax.f32 %v251, 0.0
  %v343 = vmax.f32 %v254, 0.0
  %v344 = vmax.f32 %v257, 0.0
  %v345 = vmax.f32 %v260, 0.0
  %v346 = vmax.f32 %v263, 0.0
  %v347 = vmax.f32 %v266, 0.0
  %v348 = vmax.f32 %v269, 0.0
  %v349 = vmax.f32 %v272, 0.0
  %v350 = vmax.f32 %v275, 0.0
  %v351 = vmax.f32 %v278, 0.0
  %v352 = vmax.f32 %v281, 0.0
  %v353 = vmax.f32 %v284, 0.0
  %v354 = vmax.f32 %v287, 0.0
  %v355 = vmax.f32 %v290, 0.0
  %v356 = vmax.f32 %v293, 0.0
  %v357 = vmax.f32 %v296, 0.0
  %v358 = vmax.f32 %v299, 0.0
  %v359 = vmax.f32 %v302, 0.0
  %v360 = vmax.f32 %v305, 0.0
  %v361 = vmax.f32 %v308, 0.0
  %v362 = vmax.f32 %v311, 0.0
  %v363 = vmax.f32 %v314, 0.0
  %v364 = vmax.f32 %v317, 0.0
  %v365 = vmax.f32 %v320, 0.0
  %v366 = vmax.f32 %v323, 0.0
  %v367 = vmax.f32 %v326, 0.0
  %v368 = vmax.f32 %v329, 0.0
  %v369 = vmax.f32 %v332, 0.0
  %v370 = vmax.f32 %v335, 0.0
  %v371 = vmax.f32 %v338, 0.0
  %372 = vst [vmem:[%s3] sm:$0xff] %v340
  %373 = vst [vmem:[%s3 + $0x8] sm:$0xff] %v341
  %374 = vst [vmem:[%s3 + $0x10] sm:$0xff] %v342
  %375 = vst [vmem:[%s3 + $0x18] sm:$0xff] %v343
  %376 = vst [vmem:[%s3 + $0x20] sm:$0xff] %v344
  %377 = vst [vmem:[%s3 + $0x28] sm:$0xff] %v345
  %378 = vst [vmem:[%s3 + $0x30] sm:$0xff] %v346
  %379 = vst [vmem:[%s3 + $0x38] sm:$0xff] %v347
  %380 = vst [vmem:[%s3 + $0x40] sm:$0xff] %v348
  %381 = vst [vmem:[%s3 + $0x48] sm:$0xff] %v349
  %382 = vst [vmem:[%s3 + $0x50] sm:$0xff] %v350
  %383 = vst [vmem:[%s3 + $0x58] sm:$0xff] %v351
  %384 = vst [vmem:[%s3 + $0x60] sm:$0xff] %v352
  %385 = vst [vmem:[%s3 + $0x68] sm:$0xff] %v353
  %386 = vst [vmem:[%s3 + $0x70] sm:$0xff] %v354
  %387 = vst [vmem:[%s3 + $0x78] sm:$0xff] %v355
  %388 = vst [vmem:[%s3 + $0x80] sm:$0xff] %v356
  %389 = vst [vmem:[%s3 + $0x88] sm:$0xff] %v357
  %390 = vst [vmem:[%s3 + $0x90] sm:$0xff] %v358
  %391 = vst [vmem:[%s3 + $0x98] sm:$0xff] %v359
  %392 = vst [vmem:[%s3 + $0xa0] sm:$0xff] %v360
  %393 = vst [vmem:[%s3 + $0xa8] sm:$0xff] %v361
  %394 = vst [vmem:[%s3 + $0xb0] sm:$0xff] %v362
  %395 = vst [vmem:[%s3 + $0xb8] sm:$0xff] %v363
  %396 = vst [vmem:[%s3 + $0xc0] sm:$0xff] %v364
  %397 = vst [vmem:[%s3 + $0xc8] sm:$0xff] %v365
  %398 = vst [vmem:[%s3 + $0xd0] sm:$0xff] %v366
  %399 = vst [vmem:[%s3 + $0xd8] sm:$0xff] %v367
  %400 = vst [vmem:[%s3 + $0xe0] sm:$0xff] %v368
  %401 = vst [vmem:[%s3 + $0xe8] sm:$0xff] %v369
  %402 = vst [vmem:[%s3 + $0xf0] sm:$0xff] %v370
  %403 = vst [vmem:[%s3 + $0xf8] sm:$0xff] %v371
  // Predicated region
  $region14: #{flow_model_forward.4} parent=0 // pred_check
    _
  $region15: #{flow_model_forward.4} parent=0 // pred_check_branch
    %405 = sbr.rel (0) target = $region17
  $region16: #{flow_model_forward.4} parent=0 // pred_region
    _
  $region17: #{flow_model_forward.4} parent=0 // pred_fallthru
    _
  // Predicated region
  $region18: #{flow_model_forward.4} parent=0 // pred_check
    _
  $region19: #{flow_model_forward.4} parent=0 // pred_check_branch
    %407 = sbr.rel (0) target = $region21
  $region20: #{flow_model_forward.4} parent=0 // pred_region
    _
  $region21: #{flow_model_forward.4} parent=0 // pred_fallthru
    _

// kernel: flow_model_forward.5
$region0: #{flow_model_forward.5}
  #allocation0 [shape = 'u32[]', space=smem, size = 0x4, offset = 0x4, fixed_abs, tag = 'smem constant byte address 0x4 - core index']
  #allocation1 [shape = 'u32[72,128]{1,0:T(1,128)}', space=vmem, size = 0x9000, scoped, tag = 'internal scratch']
  %s0 = inlined_call_operand.vmem [shape: f32[4,1024], index: 0, kind: input, shape index: {}]
  %s1 = inlined_call_operand.vmem [shape: f32[1024,128], index: 1, kind: input, shape index: {}]
  %s2 = inlined_call_operand.vmem [shape: f32[1,128], index: 2, kind: input, shape index: {}]
  %s3 = inlined_call_operand.hbm [shape: f32[4,128], index: 3, kind: output, shape index: {}]
  %s4 = sld [smem:[#allocation0]]
  $region22: #{flow_model_forward.5} parent=0
    _
  %s6 = ssub.s32 1, %s4
  %s7 = scalar_select 0, %s6, %s4
  $region1: #{flow_model_forward.5} parent=0
    #allocation2 [shape = 'u8[2048]{0}', space=vmem, size = 0x800, scoped, tag = 'output window, operand 0, single buffered']
    #allocation3 [shape = 's32[1]{0}', space=sflag, size = 0x4, scoped, tag = 'scoped memory for flow_model_forward.5']
    %8 = vsyncpa [#allocation3], 0
    // Predicated region
    $region2: #{flow_model_forward.5} parent=1 // pred_check
      _
    $region3: #{flow_model_forward.5} parent=1 // pred_check_branch
      %10 = sbr.rel (0) target = $region5
    $region4: #{flow_model_forward.5} parent=1 // pred_region
      _
    $region5: #{flow_model_forward.5} parent=1 // pred_fallthru
      _
    // Predicated region
    $region6: #{flow_model_forward.5} parent=1 // pred_check
      _
    $region7: #{flow_model_forward.5} parent=1 // pred_check_branch
      %12 = sbr.rel (0) target = $region9
    $region8: #{flow_model_forward.5} parent=1 // pred_region
      _
    $region9: #{flow_model_forward.5} parent=1 // pred_fallthru
      _
    // Predicated region
    $region10: #{flow_model_forward.5} parent=1 // pred_check
      _
    $region11: #{flow_model_forward.5} parent=1 // pred_check_branch
      %14 = sbr.rel (0) target = $region13
    $region12: #{flow_model_forward.5} parent=1 // pred_region
      _
    $region13: #{flow_model_forward.5} parent=1 // pred_fallthru
      _
    %v15 = vld [vmem:[%s0] sm:$0xff]
    %v16 = vld [vmem:[%s0 + $0x8] sm:$0xff]
    %v17 = vld [vmem:[%s0 + $0x10] sm:$0xff]
    %v18 = vld [vmem:[%s0 + $0x18] sm:$0xff]
    %v19 = vld [vmem:[%s1] sm:$0xff]
    %v20 = vld [vmem:[%s1 + $0x8] sm:$0xff]
    %v21 = vld [vmem:[%s1 + $0x10] sm:$0xff]
    %v22 = vld [vmem:[%s1 + $0x18] sm:$0xff]
    %v23 = vld [vmem:[%s1 + $0x20] sm:$0xff]
    %v24 = vld [vmem:[%s1 + $0x28] sm:$0xff]
    %v25 = vld [vmem:[%s1 + $0x30] sm:$0xff]
    %v26 = vld [vmem:[%s1 + $0x38] sm:$0xff]
    %v27 = vld [vmem:[%s1 + $0x40] sm:$0xff]
    %v28 = vld [vmem:[%s1 + $0x48] sm:$0xff]
    %v29 = vld [vmem:[%s1 + $0x50] sm:$0xff]
    %v30 = vld [vmem:[%s1 + $0x58] sm:$0xff]
    %v31 = vld [vmem:[%s1 + $0x60] sm:$0xff]
    %v32 = vld [vmem:[%s1 + $0x68] sm:$0xff]
    %v33 = vld [vmem:[%s1 + $0x70] sm:$0xff]
    %v34 = vld [vmem:[%s1 + $0x78] sm:$0xff]
    %v35 = vld [vmem:[%s1 + $0x80] sm:$0xff]
    %v36 = vld [vmem:[%s1 + $0x88] sm:$0xff]
    %v37 = vld [vmem:[%s1 + $0x90] sm:$0xff]
    %v38 = vld [vmem:[%s1 + $0x98] sm:$0xff]
    %v39 = vld [vmem:[%s1 + $0xa0] sm:$0xff]
    %v40 = vld [vmem:[%s1 + $0xa8] sm:$0xff]
    %v41 = vld [vmem:[%s1 + $0xb0] sm:$0xff]
    %v42 = vld [vmem:[%s1 + $0xb8] sm:$0xff]
    %v43 = vld [vmem:[%s1 + $0xc0] sm:$0xff]
    %v44 = vld [vmem:[%s1 + $0xc8] sm:$0xff]
    %v45 = vld [vmem:[%s1 + $0xd0] sm:$0xff]
    %v46 = vld [vmem:[%s1 + $0xd8] sm:$0xff]
    %v47 = vld [vmem:[%s1 + $0xe0] sm:$0xff]
    %v48 = vld [vmem:[%s1 + $0xe8] sm:$0xff]
    %v49 = vld [vmem:[%s1 + $0xf0] sm:$0xff]
    %v50 = vld [vmem:[%s1 + $0xf8] sm:$0xff]
    %v51 = vld [vmem:[%s1 + $0x100] sm:$0xff]
    %v52 = vld [vmem:[%s1 + $0x108] sm:$0xff]
    %v53 = vld [vmem:[%s1 + $0x110] sm:$0xff]
    %v54 = vld [vmem:[%s1 + $0x118] sm:$0xff]
    %v55 = vld [vmem:[%s1 + $0x120] sm:$0xff]
    %v56 = vld [vmem:[%s1 + $0x128] sm:$0xff]
    %v57 = vld [vmem:[%s1 + $0x130] sm:$0xff]
    %v58 = vld [vmem:[%s1 + $0x138] sm:$0xff]
    %v59 = vld [vmem:[%s1 + $0x140] sm:$0xff]
    %v60 = vld [vmem:[%s1 + $0x148] sm:$0xff]
    %v61 = vld [vmem:[%s1 + $0x150] sm:$0xff]
    %v62 = vld [vmem:[%s1 + $0x158] sm:$0xff]
    %v63 = vld [vmem:[%s1 + $0x160] sm:$0xff]
    %v64 = vld [vmem:[%s1 + $0x168] sm:$0xff]
    %v65 = vld [vmem:[%s1 + $0x170] sm:$0xff]
    %v66 = vld [vmem:[%s1 + $0x178] sm:$0xff]
    %v67 = vld [vmem:[%s1 + $0x180] sm:$0xff]
    %v68 = vld [vmem:[%s1 + $0x188] sm:$0xff]
    %v69 = vld [vmem:[%s1 + $0x190] sm:$0xff]
    %v70 = vld [vmem:[%s1 + $0x198] sm:$0xff]
    %v71 = vld [vmem:[%s1 + $0x1a0] sm:$0xff]
    %v72 = vld [vmem:[%s1 + $0x1a8] sm:$0xff]
    %v73 = vld [vmem:[%s1 + $0x1b0] sm:$0xff]
    %v74 = vld [vmem:[%s1 + $0x1b8] sm:$0xff]
    %v75 = vld [vmem:[%s1 + $0x1c0] sm:$0xff]
    %v76 = vld [vmem:[%s1 + $0x1c8] sm:$0xff]
    %v77 = vld [vmem:[%s1 + $0x1d0] sm:$0xff]
    %v78 = vld [vmem:[%s1 + $0x1d8] sm:$0xff]
    %v79 = vld [vmem:[%s1 + $0x1e0] sm:$0xff]
    %v80 = vld [vmem:[%s1 + $0x1e8] sm:$0xff]
    %v81 = vld [vmem:[%s1 + $0x1f0] sm:$0xff]
    %v82 = vld [vmem:[%s1 + $0x1f8] sm:$0xff]
    %v83 = vld [vmem:[%s1 + $0x200] sm:$0xff]
    %v84 = vld [vmem:[%s1 + $0x208] sm:$0xff]
    %v85 = vld [vmem:[%s1 + $0x210] sm:$0xff]
    %v86 = vld [vmem:[%s1 + $0x218] sm:$0xff]
    %v87 = vld [vmem:[%s1 + $0x220] sm:$0xff]
    %v88 = vld [vmem:[%s1 + $0x228] sm:$0xff]
    %v89 = vld [vmem:[%s1 + $0x230] sm:$0xff]
    %v90 = vld [vmem:[%s1 + $0x238] sm:$0xff]
    %v91 = vld [vmem:[%s1 + $0x240] sm:$0xff]
    %v92 = vld [vmem:[%s1 + $0x248] sm:$0xff]
    %v93 = vld [vmem:[%s1 + $0x250] sm:$0xff]
    %v94 = vld [vmem:[%s1 + $0x258] sm:$0xff]
    %v95 = vld [vmem:[%s1 + $0x260] sm:$0xff]
    %v96 = vld [vmem:[%s1 + $0x268] sm:$0xff]
    %v97 = vld [vmem:[%s1 + $0x270] sm:$0xff]
    %v98 = vld [vmem:[%s1 + $0x278] sm:$0xff]
    %v99 = vld [vmem:[%s1 + $0x280] sm:$0xff]
    %v100 = vld [vmem:[%s1 + $0x288] sm:$0xff]
    %v101 = vld [vmem:[%s1 + $0x290] sm:$0xff]
    %v102 = vld [vmem:[%s1 + $0x298] sm:$0xff]
    %v103 = vld [vmem:[%s1 + $0x2a0] sm:$0xff]
    %v104 = vld [vmem:[%s1 + $0x2a8] sm:$0xff]
    %v105 = vld [vmem:[%s1 + $0x2b0] sm:$0xff]
    %v106 = vld [vmem:[%s1 + $0x2b8] sm:$0xff]
    %v107 = vld [vmem:[%s1 + $0x2c0] sm:$0xff]
    %v108 = vld [vmem:[%s1 + $0x2c8] sm:$0xff]
    %v109 = vld [vmem:[%s1 + $0x2d0] sm:$0xff]
    %v110 = vld [vmem:[%s1 + $0x2d8] sm:$0xff]
    %v111 = vld [vmem:[%s1 + $0x2e0] sm:$0xff]
    %v112 = vld [vmem:[%s1 + $0x2e8] sm:$0xff]
    %v113 = vld [vmem:[%s1 + $0x2f0] sm:$0xff]
    %v114 = vld [vmem:[%s1 + $0x2f8] sm:$0xff]
    %v115 = vld [vmem:[%s1 + $0x300] sm:$0xff]
    %v116 = vld [vmem:[%s1 + $0x308] sm:$0xff]
    %v117 = vld [vmem:[%s1 + $0x310] sm:$0xff]
    %v118 = vld [vmem:[%s1 + $0x318] sm:$0xff]
    %v119 = vld [vmem:[%s1 + $0x320] sm:$0xff]
    %v120 = vld [vmem:[%s1 + $0x328] sm:$0xff]
    %v121 = vld [vmem:[%s1 + $0x330] sm:$0xff]
    %v122 = vld [vmem:[%s1 + $0x338] sm:$0xff]
    %v123 = vld [vmem:[%s1 + $0x340] sm:$0xff]
    %v124 = vld [vmem:[%s1 + $0x348] sm:$0xff]
    %v125 = vld [vmem:[%s1 + $0x350] sm:$0xff]
    %v126 = vld [vmem:[%s1 + $0x358] sm:$0xff]
    %v127 = vld [vmem:[%s1 + $0x360] sm:$0xff]
    %v128 = vld [vmem:[%s1 + $0x368] sm:$0xff]
    %v129 = vld [vmem:[%s1 + $0x370] sm:$0xff]
    %v130 = vld [vmem:[%s1 + $0x378] sm:$0xff]
    %v131 = vld [vmem:[%s1 + $0x380] sm:$0xff]
    %v132 = vld [vmem:[%s1 + $0x388] sm:$0xff]
    %v133 = vld [vmem:[%s1 + $0x390] sm:$0xff]
    %v134 = vld [vmem:[%s1 + $0x398] sm:$0xff]
    %v135 = vld [vmem:[%s1 + $0x3a0] sm:$0xff]
    %v136 = vld [vmem:[%s1 + $0x3a8] sm:$0xff]
    %v137 = vld [vmem:[%s1 + $0x3b0] sm:$0xff]
    %v138 = vld [vmem:[%s1 + $0x3b8] sm:$0xff]
    %v139 = vld [vmem:[%s1 + $0x3c0] sm:$0xff]
    %v140 = vld [vmem:[%s1 + $0x3c8] sm:$0xff]
    %v141 = vld [vmem:[%s1 + $0x3d0] sm:$0xff]
    %v142 = vld [vmem:[%s1 + $0x3d8] sm:$0xff]
    %v143 = vld [vmem:[%s1 + $0x3e0] sm:$0xff]
    %v144 = vld [vmem:[%s1 + $0x3e8] sm:$0xff]
    %v145 = vld [vmem:[%s1 + $0x3f0] sm:$0xff]
    %v146 = vld [vmem:[%s1 + $0x3f8] sm:$0xff]
    %v147 = vld [vmem:[%s2] sm:$0x1]
    %v149 = vperm.slane %v147, 0
    %155 = vst [vmem:[#allocation1] ss:$2 sm:$0xff] %v15
    %s156 = scalar_lea.vmem [#allocation1], 16
    %157 = vst [vmem:[%s156] ss:$2 sm:$0xff] %v16
    %s158 = scalar_lea.vmem [#allocation1], 32
    %159 = vst [vmem:[%s158] ss:$2 sm:$0xff] %v17
    %s160 = scalar_lea.vmem [#allocation1], 48
    %161 = vst [vmem:[%s160] ss:$2 sm:$0xff] %v18
    %v162 = vld.sshfl [vmem:[#allocation1] sm:$0xff pattern:$0x75316420]
    %v163 = vld.sshfl [vmem:[#allocation1 + $0x8] sm:$0xff pattern:$0x75316420]
    %v164 = vld.sshfl [vmem:[#allocation1 + $0x10] sm:$0xff pattern:$0x75316420]
    %v165 = vld.sshfl [vmem:[#allocation1 + $0x18] sm:$0xff pattern:$0x75316420]
    %v166 = vld.sshfl [vmem:[#allocation1 + $0x20] sm:$0xff pattern:$0x75316420]
    %v167 = vld.sshfl [vmem:[#allocation1 + $0x28] sm:$0xff pattern:$0x75316420]
    %v168 = vld.sshfl [vmem:[#allocation1 + $0x30] sm:$0xff pattern:$0x75316420]
    %v169 = vld.sshfl [vmem:[#allocation1 + $0x38] sm:$0xff pattern:$0x75316420]
    %178 = vmatpush.msra.mxu0 %v34
    %179 = vmatpush.msra.mxu0 %v33
    %180 = vmatpush.msra.mxu0 %v32
    %181 = vmatpush.msra.mxu0 %v31
    %182 = vmatpush.msra.mxu0 %v30
    %183 = vmatpush.msra.mxu0 %v29
    %184 = vmatpush.msra.mxu0 %v28
    %185 = vmatpush.msra.mxu0 %v27
    %186 = vmatpush.msra.mxu0 %v26
    %187 = vmatpush.msra.mxu0 %v25
    %188 = vmatpush.msra.mxu0 %v24
    %189 = vmatpush.msra.mxu0 %v23
    %190 = vmatpush.msra.mxu0 %v22
    %191 = vmatpush.msra.mxu0 %v21
    %192 = vmatpush.msra.mxu0 %v20
    %193 = vmatpush.msra.mxu0 %v19
    %194 = vmatmul.f32.gmra.mxu0 %v162
    %v195 = vpop.f32.mrf.mxu0
    %v196 = vadd.f32 %v149, %v195
    %197 = vdwg.mxu0
    %198 = vmatpush.msra.mxu0 %v50
    %199 = vmatpush.msra.mxu0 %v49
    %200 = vmatpush.msra.mxu0 %v48
    %201 = vmatpush.msra.mxu0 %v47
    %202 = vmatpush.msra.mxu0 %v46
    %203 = vmatpush.msra.mxu0 %v45
    %204 = vmatpush.msra.mxu0 %v44
    %205 = vmatpush.msra.mxu0 %v43
    %206 = vmatpush.msra.mxu0 %v42
    %207 = vmatpush.msra.mxu0 %v41
    %208 = vmatpush.msra.mxu0 %v40
    %209 = vmatpush.msra.mxu0 %v39
    %210 = vmatpush.msra.mxu0 %v38
    %211 = vmatpush.msra.mxu0 %v37
    %212 = vmatpush.msra.mxu0 %v36
    %213 = vmatpush.msra.mxu0 %v35
    %214 = vmatmul.f32.gmra.mxu0 %v163
    %v215 = vpop.f32.mrf.mxu0
    %v216 = vadd.f32 %v196, %v215
    %217 = vdwg.mxu0
    %218 = vmatpush.msra.mxu0 %v66
    %219 = vmatpush.msra.mxu0 %v65
    %220 = vmatpush.msra.mxu0 %v64
    %221 = vmatpush.msra.mxu0 %v63
    %222 = vmatpush.msra.mxu0 %v62
    %223 = vmatpush.msra.mxu0 %v61
    %224 = vmatpush.msra.mxu0 %v60
    %225 = vmatpush.msra.mxu0 %v59
    %226 = vmatpush.msra.mxu0 %v58
    %227 = vmatpush.msra.mxu0 %v57
    %228 = vmatpush.msra.mxu0 %v56
    %229 = vmatpush.msra.mxu0 %v55
    %230 = vmatpush.msra.mxu0 %v54
    %231 = vmatpush.msra.mxu0 %v53
    %232 = vmatpush.msra.mxu0 %v52
    %233 = vmatpush.msra.mxu0 %v51
    %234 = vmatmul.f32.gmra.mxu0 %v164
    %v235 = vpop.f32.mrf.mxu0
    %v236 = vadd.f32 %v216, %v235
    %237 = vdwg.mxu0
    %238 = vmatpush.msra.mxu0 %v82
    %239 = vmatpush.msra.mxu0 %v81
    %240 = vmatpush.msra.mxu0 %v80
    %241 = vmatpush.msra.mxu0 %v79
    %242 = vmatpush.msra.mxu0 %v78
    %243 = vmatpush.msra.mxu0 %v77
    %244 = vmatpush.msra.mxu0 %v76
    %245 = vmatpush.msra.mxu0 %v75
    %246 = vmatpush.msra.mxu0 %v74
    %247 = vmatpush.msra.mxu0 %v73
    %248 = vmatpush.msra.mxu0 %v72
    %249 = vmatpush.msra.mxu0 %v71
    %250 = vmatpush.msra.mxu0 %v70
    %251 = vmatpush.msra.mxu0 %v69
    %252 = vmatpush.msra.mxu0 %v68
    %253 = vmatpush.msra.mxu0 %v67
    %254 = vmatmul.f32.gmra.mxu0 %v165
    %v255 = vpop.f32.mrf.mxu0
    %v256 = vadd.f32 %v236, %v255
    %257 = vdwg.mxu0
    %258 = vmatpush.msra.mxu0 %v98
    %259 = vmatpush.msra.mxu0 %v97
    %260 = vmatpush.msra.mxu0 %v96
    %261 = vmatpush.msra.mxu0 %v95
    %262 = vmatpush.msra.mxu0 %v94
    %263 = vmatpush.msra.mxu0 %v93
    %264 = vmatpush.msra.mxu0 %v92
    %265 = vmatpush.msra.mxu0 %v91
    %266 = vmatpush.msra.mxu0 %v90
    %267 = vmatpush.msra.mxu0 %v89
    %268 = vmatpush.msra.mxu0 %v88
    %269 = vmatpush.msra.mxu0 %v87
    %270 = vmatpush.msra.mxu0 %v86
    %271 = vmatpush.msra.mxu0 %v85
    %272 = vmatpush.msra.mxu0 %v84
    %273 = vmatpush.msra.mxu0 %v83
    %274 = vmatmul.f32.gmra.mxu0 %v166
    %v275 = vpop.f32.mrf.mxu0
    %v276 = vadd.f32 %v256, %v275
    %277 = vdwg.mxu0
    %278 = vmatpush.msra.mxu0 %v114
    %279 = vmatpush.msra.mxu0 %v113
    %280 = vmatpush.msra.mxu0 %v112
    %281 = vmatpush.msra.mxu0 %v111
    %282 = vmatpush.msra.mxu0 %v110
    %283 = vmatpush.msra.mxu0 %v109
    %284 = vmatpush.msra.mxu0 %v108
    %285 = vmatpush.msra.mxu0 %v107
    %286 = vmatpush.msra.mxu0 %v106
    %287 = vmatpush.msra.mxu0 %v105
    %288 = vmatpush.msra.mxu0 %v104
    %289 = vmatpush.msra.mxu0 %v103
    %290 = vmatpush.msra.mxu0 %v102
    %291 = vmatpush.msra.mxu0 %v101
    %292 = vmatpush.msra.mxu0 %v100
    %293 = vmatpush.msra.mxu0 %v99
    %294 = vmatmul.f32.gmra.mxu0 %v167
    %v295 = vpop.f32.mrf.mxu0
    %v296 = vadd.f32 %v276, %v295
    %297 = vdwg.mxu0
    %298 = vmatpush.msra.mxu0 %v130
    %299 = vmatpush.msra.mxu0 %v129
    %300 = vmatpush.msra.mxu0 %v128
    %301 = vmatpush.msra.mxu0 %v127
    %302 = vmatpush.msra.mxu0 %v126
    %303 = vmatpush.msra.mxu0 %v125
    %304 = vmatpush.msra.mxu0 %v124
    %305 = vmatpush.msra.mxu0 %v123
    %306 = vmatpush.msra.mxu0 %v122
    %307 = vmatpush.msra.mxu0 %v121
    %308 = vmatpush.msra.mxu0 %v120
    %309 = vmatpush.msra.mxu0 %v119
    %310 = vmatpush.msra.mxu0 %v118
    %311 = vmatpush.msra.mxu0 %v117
    %312 = vmatpush.msra.mxu0 %v116
    %313 = vmatpush.msra.mxu0 %v115
    %314 = vmatmul.f32.gmra.mxu0 %v168
    %v315 = vpop.f32.mrf.mxu0
    %v316 = vadd.f32 %v296, %v315
    %317 = vdwg.mxu0
    %318 = vmatpush.msra.mxu0 %v146
    %319 = vmatpush.msra.mxu0 %v145
    %320 = vmatpush.msra.mxu0 %v144
    %321 = vmatpush.msra.mxu0 %v143
    %322 = vmatpush.msra.mxu0 %v142
    %323 = vmatpush.msra.mxu0 %v141
    %324 = vmatpush.msra.mxu0 %v140
    %325 = vmatpush.msra.mxu0 %v139
    %326 = vmatpush.msra.mxu0 %v138
    %327 = vmatpush.msra.mxu0 %v137
    %328 = vmatpush.msra.mxu0 %v136
    %329 = vmatpush.msra.mxu0 %v135
    %330 = vmatpush.msra.mxu0 %v134
    %331 = vmatpush.msra.mxu0 %v133
    %332 = vmatpush.msra.mxu0 %v132
    %333 = vmatpush.msra.mxu0 %v131
    %334 = vmatmul.f32.gmra.mxu0 %v169
    %v335 = vpop.f32.mrf.mxu0
    %v336 = vadd.f32 %v316, %v335
    %337 = vdwg.mxu0
    %338 = vst [vmem:[#allocation2] sm:$0xf] %v336
    // Predicated region
    $region14: #{flow_model_forward.5} parent=1 // pred_check
      _
    $region15: #{flow_model_forward.5} parent=1 // pred_check_branch
      %340 = sbr.rel (0) target = $region17
    $region16: #{flow_model_forward.5} parent=1 // pred_region
      %342 = vsyncadd [#allocation3], 0
      %s344 = sshll.u32 [#allocation2], 4
      %s345 = int_to_ptr.vmem [resolvable:$true] %s344
      %s346 = sshll.u32 %s3, 4
      %s347 = int_to_ptr.hbm [resolvable:$true] %s346
      %349 = dma.vmem_to_hbm [thread:$0]  %s345, 64, %s347, [#allocation3]
    $region17: #{flow_model_forward.5} parent=1 // pred_fallthru
      _
    // Predicated region
    $region18: #{flow_model_forward.5} parent=1 // pred_check
      _
    $region19: #{flow_model_forward.5} parent=1 // pred_check_branch
      %351 = sbr.rel (0) target = $region21
    $region20: #{flow_model_forward.5} parent=1 // pred_region
      %353 = dma.done [#allocation3], 64
    $region21: #{flow_model_forward.5} parent=1 // pred_fallthru
      _
    %354 = vsyncpa [#allocation3], 1

</llo_original>
